<compile_context>
chip_gen: v6e
topology: v6e:2x2x1
jax: 0.10.0
libtpu: 0.0.40
codegen_flags: <defaults>
</compile_context>

<pallas_src>
import functools

import jax
import jax.numpy as jnp
import numpy as np
from jax.experimental import pallas as pl
from jax.experimental.pallas import tpu as pltpu


def _round_up(x, m):
    return (x + m - 1) // m * m


def _decoder_step_kernel(H, Hp, use_query_proj, compute_dtype, *refs):
    """Fused decoder step. Grid axis 0 tiles the output vocabulary.

    The GRU + attention + concat 'prologue' runs once (grid step 0) and its
    result is stashed in a VMEM scratch; every grid step then does one
    (B, H) @ (H, tile_V) output-projection tile.
    """
    if use_query_proj:
        (emb_ref, h_ref, enc_ref,
         wih_ref, whh_ref, bih_ref, bhh_ref,
         wq_ref, bq_ref,
         wcr_ref, wcc_ref, bc_ref,
         wout_ref, bout_ref,
         logits_ref, ctx_ref, hid_ref, attn_ref,
         concat_sc) = refs
    else:
        (emb_ref, h_ref, enc_ref,
         wih_ref, whh_ref, bih_ref, bhh_ref,
         wcr_ref, wcc_ref, bc_ref,
         wout_ref, bout_ref,
         logits_ref, ctx_ref, hid_ref, attn_ref,
         concat_sc) = refs
        wq_ref = bq_ref = None

    cdt = compute_dtype

    @pl.when(pl.program_id(0) == 0)
    def _prologue():
        x = emb_ref[...]                           # (B, H)   embedded token
        h = h_ref[...]                             # (B, H)   prev hidden (f32)

        # --- GRU cell: two fused gate GEMMs (r|z|n, lane-aligned blocks) ----
        gi = jnp.dot(x, wih_ref[...], preferred_element_type=jnp.float32) + bih_ref[...]
        gh = jnp.dot(h.astype(cdt), whh_ref[...], preferred_element_type=jnp.float32) + bhh_ref[...]
        r = jax.nn.sigmoid(gi[:, 0:H] + gh[:, 0:H])
        z = jax.nn.sigmoid(gi[:, Hp:Hp + H] + gh[:, Hp:Hp + H])
        n = jnp.tanh(gi[:, 2 * Hp:2 * Hp + H] + r * gh[:, 2 * Hp:2 * Hp + H])
        h_new = (1.0 - z) * n + z * h              # (B, H) == rnn_output
        hid_ref[...] = h_new

        # --- Luong attention (MXU batched contractions over enc) -----------
        enc = enc_ref[...]                         # (B, T, H) single copy
        if use_query_proj:
            # 'general': h·(W e + b) == (h @ W)·e + h·b  -> project the query,
            # not the T-scaled keys.
            q = jnp.dot(h_new.astype(cdt), wq_ref[...],
                        preferred_element_type=jnp.float32)
            score_bias = jnp.sum(h_new * bq_ref[...], axis=-1, keepdims=True)  # (B,1)
        else:
            q = h_new
            score_bias = None

        q3 = q.astype(cdt)[:, None, :]             # (B, 1, H)
        scores = jnp.einsum('bqh,bkh->bqk', q3, enc,
                            preferred_element_type=jnp.float32)   # (B, 1, T)
        if score_bias is not None:
            scores = scores + score_bias[:, :, None]

        m = jnp.max(scores, axis=-1, keepdims=True)
        e = jnp.exp(scores - m)
        denom = jnp.sum(e, axis=-1, keepdims=True)
        attn = e * pl.reciprocal(denom, approx=True)               # (B, 1, T)
        attn_ref[...] = attn

        ctx3 = jnp.einsum('bqk,bkh->bqh', attn.astype(cdt), enc,
                          preferred_element_type=jnp.float32)      # (B, 1, H)
        context = jnp.sum(ctx3, axis=1)                            # (B, H)
        ctx_ref[...] = context

        # --- concat layer, split to avoid an in-kernel concat ---------------
        pre = (jnp.dot(h_new.astype(cdt), wcr_ref[...],
                       preferred_element_type=jnp.float32)
               + jnp.dot(context.astype(cdt), wcc_ref[...],
                         preferred_element_type=jnp.float32)
               + bc_ref[...])
        concat_sc[...] = jnp.tanh(pre).astype(concat_sc.dtype)

    # --- output projection: one lane-dense vocab tile per grid step ---------
    logits_ref[...] = (jnp.dot(concat_sc[...], wout_ref[...],
                               preferred_element_type=jnp.float32)
                       + bout_ref[...])


def luong_attn_decoder_forward(input_seq, last_context, last_hidden,
                               encoder_outputs, params, attn_model="dot",
                               compute_dtype=jnp.bfloat16, tile_v=512):
    """Pallas implementation of LuongAttnDecoderRNN.forward (num_layers=1)."""
    del last_context  # unused by the reference forward (only returned anew)
    if attn_model not in ("dot", "general"):
        # TODO(synk): 'concat' scoring variant not implemented in the kernel.
        raise NotImplementedError(f"attn_model={attn_model!r}")

    B = int(input_seq.shape[0])
    T = int(encoder_outputs.shape[0])
    H = int(encoder_outputs.shape[2])
    V = int(params["w_out"].shape[0])
    f32 = jnp.float32
    cdt = compute_dtype

    Bp = _round_up(max(B, 1), 8)              # sublane multiple
    Hp = _round_up(H, 128)                    # lane-aligned gate blocks
    tile_v = min(_round_up(tile_v, 128), _round_up(V, 128))
    Vp = _round_up(V, tile_v)                 # lane-dense, tile-divisible vocab
    n_vt = Vp // tile_v

    # --- plain-JAX glue: token gather + layout (no recurrent dependence) ----
    embedded = params["embedding"][input_seq].astype(cdt)             # (B, H)
    # TODO(synk): embedding_dropout / GRU dropout are inert in eval mode
    # (nn.GRU only applies dropout between layers and num_layers == 1).
    h0 = last_hidden[0].astype(f32)                                   # (B, H)
    enc = jnp.transpose(encoder_outputs, (1, 0, 2)).astype(cdt)       # (B, T, H)

    if Bp != B:
        embedded = jnp.pad(embedded, ((0, Bp - B), (0, 0)))
        h0 = jnp.pad(h0, ((0, Bp - B), (0, 0)))
        enc = jnp.pad(enc, ((0, Bp - B), (0, 0), (0, 0)))

    # --- fused GRU gate weights: (H, 3*Hp), gate blocks lane-aligned --------
    def pack_gates(w, b):
        w_t = jnp.asarray(w, f32).T                                   # (H, 3H)
        b = jnp.asarray(b, f32)
        wp = jnp.zeros((H, 3 * Hp), f32)
        bp = jnp.zeros((1, 3 * Hp), f32)
        for g in range(3):
            wp = wp.at[:, g * Hp:g * Hp + H].set(w_t[:, g * H:(g + 1) * H])
            bp = bp.at[0, g * Hp:g * Hp + H].set(b[g * H:(g + 1) * H])
        return wp.astype(cdt), bp

    w_ih, b_ih = pack_gates(params["w_ih"], params["b_ih"])
    w_hh, b_hh = pack_gates(params["w_hh"], params["b_hh"])

    wc_r = jnp.asarray(params["w_concat"][:, :H], f32).T.astype(cdt)  # (H, H)
    wc_c = jnp.asarray(params["w_concat"][:, H:], f32).T.astype(cdt)  # (H, H)
    b_c = jnp.asarray(params["b_concat"], f32).reshape(1, H)

    w_out = (jnp.zeros((H, Vp), f32)
             .at[:, :V].set(jnp.asarray(params["w_out"], f32).T)).astype(cdt)
    b_out = jnp.zeros((1, Vp), f32).at[0, :V].set(jnp.asarray(params["b_out"], f32))

    use_qproj = attn_model == "general"

    operands = [embedded, h0, enc, w_ih, w_hh, b_ih, b_hh]
    in_specs = [
        pl.BlockSpec((Bp, H), lambda j: (0, 0)),
        pl.BlockSpec((Bp, H), lambda j: (0, 0)),
        pl.BlockSpec((Bp, T, H), lambda j: (0, 0, 0)),
        pl.BlockSpec((H, 3 * Hp), lambda j: (0, 0)),
        pl.BlockSpec((H, 3 * Hp), lambda j: (0, 0)),
        pl.BlockSpec((1, 3 * Hp), lambda j: (0, 0)),
        pl.BlockSpec((1, 3 * Hp), lambda j: (0, 0)),
    ]
    if use_qproj:
        w_q = jnp.asarray(params["w_attn"], f32).astype(cdt)          # q = h @ W
        b_q = jnp.asarray(params["b_attn"], f32).reshape(1, H)
        operands += [w_q, b_q]
        in_specs += [pl.BlockSpec((H, H), lambda j: (0, 0)),
                     pl.BlockSpec((1, H), lambda j: (0, 0))]
    operands += [wc_r, wc_c, b_c, w_out, b_out]
    in_specs += [
        pl.BlockSpec((H, H), lambda j: (0, 0)),
        pl.BlockSpec((H, H), lambda j: (0, 0)),
        pl.BlockSpec((1, H), lambda j: (0, 0)),
        pl.BlockSpec((H, tile_v), lambda j: (0, j)),      # vocab-tiled weight
        pl.BlockSpec((1, tile_v), lambda j: (0, j)),
    ]

    out_shapes = (
        jax.ShapeDtypeStruct((Bp, Vp), f32),      # logits (padded)
        jax.ShapeDtypeStruct((Bp, H), f32),       # context
        jax.ShapeDtypeStruct((Bp, H), f32),       # new hidden
        jax.ShapeDtypeStruct((Bp, 1, T), f32),    # attention weights
    )
    out_specs = (
        pl.BlockSpec((Bp, tile_v), lambda j: (0, j)),
        pl.BlockSpec((Bp, H), lambda j: (0, 0)),
        pl.BlockSpec((Bp, H), lambda j: (0, 0)),
        pl.BlockSpec((Bp, 1, T), lambda j: (0, 0, 0)),
    )
    scratch_shapes = [pltpu.VMEM((Bp, H), cdt)]   # tanh(concat) reused per tile

    # VMEM budget sized from the actual block footprint (+ double buffering).
    def nbytes(shape, dtype):
        return int(np.prod(shape)) * jnp.dtype(dtype).itemsize
    block_bytes = (sum(nbytes(a.shape, a.dtype) for a in operands)
                   + sum(nbytes(s.shape, s.dtype) for s in out_shapes)
                   + nbytes((Bp, H), cdt))
    vmem_limit = int(min(max(2 * block_bytes + (8 << 20), 32 << 20), 100 << 20))

    kernel = functools.partial(_decoder_step_kernel, H, Hp, use_qproj, cdt)

    logits, context, hidden, attnw = pl.pallas_call(
        kernel,
        out_shape=out_shapes,
        grid_spec=pltpu.PrefetchScalarGridSpec(
            num_scalar_prefetch=0,
            grid=(n_vt,),
            in_specs=in_specs,
            out_specs=out_specs,
            scratch_shapes=scratch_shapes,
        ),
        compiler_params=pltpu.CompilerParams(
            # Sequential vocab axis: the GRU/attention prologue runs once and
            # is reused from scratch for every vocab tile.
            dimension_semantics=("arbitrary",),
            vmem_limit_bytes=vmem_limit,
        ),
    )(*operands)

    # Wrapper-side layout plumbing to the PyTorch return shapes.
    return (logits[:B, :V],          # (B, V)
            context[:B],             # (B, H)
            hidden[:B][None],        # (1, B, H)
            attnw[:B])               # (B, 1, T)


# --------------------------- pure-JAX reference -----------------------------
def luong_attn_decoder_reference(input_seq, last_context, last_hidden,
                                 encoder_outputs, params, attn_model="dot"):
    del last_context
    H = params["embedding"].shape[1]
    emb = params["embedding"][input_seq].astype(jnp.float32)
    h = last_hidden[0].astype(jnp.float32)

    gi = emb @ params["w_ih"].T + params["b_ih"]
    gh = h @ params["w_hh"].T + params["b_hh"]
    r = jax.nn.sigmoid(gi[:, :H] + gh[:, :H])
    z = jax.nn.sigmoid(gi[:, H:2 * H] + gh[:, H:2 * H])
    n = jnp.tanh(gi[:, 2 * H:] + r * gh[:, 2 * H:])
    h_new = (1.0 - z) * n + z * h

    if attn_model == "general":
        keys = encoder_outputs @ params["w_attn"].T + params["b_attn"]
    else:
        keys = encoder_outputs
    scores = jnp.einsum("bh,tbh->bt", h_new, keys)
    attnw = jax.nn.softmax(scores, axis=-1)
    context = jnp.einsum("bt,tbh->bh", attnw, encoder_outputs)

    cat = jnp.concatenate([h_new, context], axis=1)
    concat_out = jnp.tanh(cat @ params["w_concat"].T + params["b_concat"])
    logits = concat_out @ params["w_out"].T + params["b_out"]
    return logits, context, h_new[None], attnw[:, None, :]


if __name__ == "__main__":
    HIDDEN = 32
    VOCAB = 50
    T, B = 8, 4

    key = jax.random.PRNGKey(0)
    ks = jax.random.split(key, 14)
    params = {
        "embedding": 0.1 * jax.random.normal(ks[0], (VOCAB, HIDDEN), jnp.float32),
        "w_ih": 0.1 * jax.random.normal(ks[1], (3 * HIDDEN, HIDDEN), jnp.float32),
        "w_hh": 0.1 * jax.random.normal(ks[2], (3 * HIDDEN, HIDDEN), jnp.float32),
        "b_ih": 0.1 * jax.random.normal(ks[3], (3 * HIDDEN,), jnp.float32),
        "b_hh": 0.1 * jax.random.normal(ks[4], (3 * HIDDEN,), jnp.float32),
        "w_attn": 0.1 * jax.random.normal(ks[5], (HIDDEN, HIDDEN), jnp.float32),
        "b_attn": 0.1 * jax.random.normal(ks[6], (HIDDEN,), jnp.float32),
        "w_concat": 0.1 * jax.random.normal(ks[7], (HIDDEN, 2 * HIDDEN), jnp.float32),
        "b_concat": 0.1 * jax.random.normal(ks[8], (HIDDEN,), jnp.float32),
        "w_out": 0.1 * jax.random.normal(ks[9], (VOCAB, HIDDEN), jnp.float32),
        "b_out": 0.1 * jax.random.normal(ks[10], (VOCAB,), jnp.float32),
    }
    input_seq = jax.random.randint(ks[11], (B,), 0, VOCAB, dtype=jnp.int32)
    last_context = jnp.zeros((B, HIDDEN), jnp.float32)
    last_hidden = 0.1 * jax.random.normal(ks[12], (1, B, HIDDEN), jnp.float32)
    encoder_outputs = 0.1 * jax.random.normal(ks[13], (T, B, HIDDEN), jnp.float32)

    for attn_model in ("dot", "general"):
        ref = luong_attn_decoder_reference(input_seq, last_context, last_hidden,
                                           encoder_outputs, params, attn_model)
        # f32 compute path: tight structural check.
        got32 = luong_attn_decoder_forward(input_seq, last_context, last_hidden,
                                           encoder_outputs, params, attn_model,
                                           compute_dtype=jnp.float32)
        jax.block_until_ready(got32)
        for g, r in zip(got32, ref):
            np.testing.assert_allclose(np.asarray(g), np.asarray(r),
                                       atol=5e-3, rtol=5e-3)
        # bf16 weights/activations on the MXU (production configuration).
        got16 = luong_attn_decoder_forward(input_seq, last_context, last_hidden,
                                           encoder_outputs, params, attn_model,
                                           compute_dtype=jnp.bfloat16)
        jax.block_until_ready(got16)
        for g, r in zip(got16, ref):
            np.testing.assert_allclose(np.asarray(g), np.asarray(r),
                                       atol=2e-2, rtol=2e-2)

    print("KERNEL_OK")
</pallas_src>

<mosaic_0001>
module attributes {stable_mosaic.version = 11 : i64} {
  func.func @_decoder_step_kernel(%arg0: i32, %arg1: memref<8x32xf32, #tpu.memory_space<vmem>>, %arg2: memref<8x32xf32, #tpu.memory_space<vmem>>, %arg3: memref<8x8x32xf32, #tpu.memory_space<vmem>>, %arg4: memref<32x384xf32, #tpu.memory_space<vmem>>, %arg5: memref<32x384xf32, #tpu.memory_space<vmem>>, %arg6: memref<1x384xf32, #tpu.memory_space<vmem>>, %arg7: memref<1x384xf32, #tpu.memory_space<vmem>>, %arg8: memref<32x32xf32, #tpu.memory_space<vmem>>, %arg9: memref<32x32xf32, #tpu.memory_space<vmem>>, %arg10: memref<1x32xf32, #tpu.memory_space<vmem>>, %arg11: memref<32x128xf32, #tpu.memory_space<vmem>>, %arg12: memref<1x128xf32, #tpu.memory_space<vmem>>, %arg13: memref<8x128xf32, #tpu.memory_space<vmem>>, %arg14: memref<8x32xf32, #tpu.memory_space<vmem>>, %arg15: memref<8x32xf32, #tpu.memory_space<vmem>>, %arg16: memref<8x1x8xf32, #tpu.memory_space<vmem>>, %arg17: memref<8x32xf32, #tpu.memory_space<vmem>>) attributes {dimension_semantics = [#tpu.dimension_semantics<arbitrary>], iteration_bounds = array<i64: 1>, scalar_prefetch = 0 : i64, scratch_operands = 1 : i64, tpu.core_type = #tpu.core_type<tc>, window_params = [{pipeline_mode = #tpu.pipeline_mode<synchronous>, transform_indices = @transform_0, window_bounds = array<i64: 8, 32>}, {pipeline_mode = #tpu.pipeline_mode<synchronous>, transform_indices = @transform_1, window_bounds = array<i64: 8, 32>}, {pipeline_mode = #tpu.pipeline_mode<synchronous>, transform_indices = @transform_2, window_bounds = array<i64: 8, 8, 32>}, {pipeline_mode = #tpu.pipeline_mode<synchronous>, transform_indices = @transform_3, window_bounds = array<i64: 32, 384>}, {pipeline_mode = #tpu.pipeline_mode<synchronous>, transform_indices = @transform_4, window_bounds = array<i64: 32, 384>}, {pipeline_mode = #tpu.pipeline_mode<synchronous>, transform_indices = @transform_5, window_bounds = array<i64: 1, 384>}, {pipeline_mode = #tpu.pipeline_mode<synchronous>, transform_indices = @transform_6, window_bounds = array<i64: 1, 384>}, {pipeline_mode = #tpu.pipeline_mode<synchronous>, transform_indices = @transform_7, window_bounds = array<i64: 32, 32>}, {pipeline_mode = #tpu.pipeline_mode<synchronous>, transform_indices = @transform_8, window_bounds = array<i64: 32, 32>}, {pipeline_mode = #tpu.pipeline_mode<synchronous>, transform_indices = @transform_9, window_bounds = array<i64: 1, 32>}, {transform_indices = @transform_10, window_bounds = array<i64: 32, 128>}, {transform_indices = @transform_11, window_bounds = array<i64: 1, 128>}, {transform_indices = @transform_12, window_bounds = array<i64: 8, 128>}, {pipeline_mode = #tpu.pipeline_mode<synchronous>, transform_indices = @transform_13, window_bounds = array<i64: 8, 32>}, {pipeline_mode = #tpu.pipeline_mode<synchronous>, transform_indices = @transform_14, window_bounds = array<i64: 8, 32>}, {pipeline_mode = #tpu.pipeline_mode<synchronous>, transform_indices = @transform_15, window_bounds = array<i64: 8, 1, 8>}]} {
    %c0_i32 = arith.constant 0 : i32
    %0 = arith.cmpi eq, %arg0, %c0_i32 : i32
    %1 = arith.extui %0 : i1 to i32
    %c0_i32_0 = arith.constant 0 : i32
    %2 = arith.cmpi ne, %1, %c0_i32_0 : i32
    scf.if %2 {
      %c0_8 = arith.constant 0 : index
      %c0_9 = arith.constant 0 : index
      %10 = vector.load %arg1[%c0_8, %c0_9] : memref<8x32xf32, #tpu.memory_space<vmem>>, vector<8x32xf32>
      %c0_10 = arith.constant 0 : index
      %c0_11 = arith.constant 0 : index
      %11 = vector.load %arg2[%c0_10, %c0_11] : memref<8x32xf32, #tpu.memory_space<vmem>>, vector<8x32xf32>
      %c0_12 = arith.constant 0 : index
      %c0_13 = arith.constant 0 : index
      %12 = vector.load %arg4[%c0_12, %c0_13] : memref<32x384xf32, #tpu.memory_space<vmem>>, vector<32x384xf32>
      %cst_14 = arith.constant dense<0.000000e+00> : vector<8x384xf32>
      %13 = tpu.matmul %10, %12, %cst_14 {dimension_numbers = #tpu.dot_dimension_numbers<[1], [0], [0], [1], [0, 0, 1, 1], [], []>} : vector<8x32xf32>, vector<32x384xf32>, vector<8x384xf32> -> vector<8x384xf32>
      %c0_15 = arith.constant 0 : index
      %c0_16 = arith.constant 0 : index
      %14 = vector.load %arg6[%c0_15, %c0_16] : memref<1x384xf32, #tpu.memory_space<vmem>>, vector<1x384xf32>
      %15 = vector.broadcast %14 : vector<1x384xf32> to vector<8x384xf32>
      %16 = arith.addf %13, %15 : vector<8x384xf32>
      %c0_17 = arith.constant 0 : index
      %c0_18 = arith.constant 0 : index
      %17 = vector.load %arg5[%c0_17, %c0_18] : memref<32x384xf32, #tpu.memory_space<vmem>>, vector<32x384xf32>
      %cst_19 = arith.constant dense<0.000000e+00> : vector<8x384xf32>
      %18 = tpu.matmul %11, %17, %cst_19 {dimension_numbers = #tpu.dot_dimension_numbers<[1], [0], [0], [1], [0, 0, 1, 1], [], []>} : vector<8x32xf32>, vector<32x384xf32>, vector<8x384xf32> -> vector<8x384xf32>
      %c0_20 = arith.constant 0 : index
      %c0_21 = arith.constant 0 : index
      %19 = vector.load %arg7[%c0_20, %c0_21] : memref<1x384xf32, #tpu.memory_space<vmem>>, vector<1x384xf32>
      %20 = vector.broadcast %19 : vector<1x384xf32> to vector<8x384xf32>
      %21 = arith.addf %18, %20 : vector<8x384xf32>
      %22 = vector.extract_strided_slice %16 {offsets = [0, 0], sizes = [8, 32], strides = [1, 1]} : vector<8x384xf32> to vector<8x32xf32>
      %23 = vector.extract_strided_slice %21 {offsets = [0, 0], sizes = [8, 32], strides = [1, 1]} : vector<8x384xf32> to vector<8x32xf32>
      %24 = arith.addf %22, %23 : vector<8x32xf32>
      %25 = arith.negf %24 : vector<8x32xf32>
      %26 = math.exp %25 : vector<8x32xf32>
      %cst_22 = arith.constant 1.000000e+00 : f32
      %27 = vector.broadcast %cst_22 : f32 to vector<8x32xf32>
      %28 = arith.addf %27, %26 : vector<8x32xf32>
      %29 = arith.divf %27, %28 : vector<8x32xf32>
      %30 = vector.extract_strided_slice %16 {offsets = [0, 128], sizes = [8, 32], strides = [1, 1]} : vector<8x384xf32> to vector<8x32xf32>
      %31 = vector.extract_strided_slice %21 {offsets = [0, 128], sizes = [8, 32], strides = [1, 1]} : vector<8x384xf32> to vector<8x32xf32>
      %32 = arith.addf %30, %31 : vector<8x32xf32>
      %33 = arith.negf %32 : vector<8x32xf32>
      %34 = math.exp %33 : vector<8x32xf32>
      %cst_23 = arith.constant 1.000000e+00 : f32
      %35 = vector.broadcast %cst_23 : f32 to vector<8x32xf32>
      %36 = arith.addf %35, %34 : vector<8x32xf32>
      %37 = arith.divf %35, %36 : vector<8x32xf32>
      %38 = vector.extract_strided_slice %16 {offsets = [0, 256], sizes = [8, 32], strides = [1, 1]} : vector<8x384xf32> to vector<8x32xf32>
      %39 = vector.extract_strided_slice %21 {offsets = [0, 256], sizes = [8, 32], strides = [1, 1]} : vector<8x384xf32> to vector<8x32xf32>
      %40 = arith.mulf %29, %39 : vector<8x32xf32>
      %41 = arith.addf %38, %40 : vector<8x32xf32>
      %42 = math.tanh %41 : vector<8x32xf32>
      %cst_24 = arith.constant 1.000000e+00 : f32
      %43 = vector.broadcast %cst_24 : f32 to vector<8x32xf32>
      %44 = arith.subf %43, %37 : vector<8x32xf32>
      %45 = arith.mulf %44, %42 : vector<8x32xf32>
      %46 = arith.mulf %37, %11 : vector<8x32xf32>
      %47 = arith.addf %45, %46 : vector<8x32xf32>
      %c0_25 = arith.constant 0 : index
      %c0_26 = arith.constant 0 : index
      %48 = vector.load %arg15[%c0_25, %c0_26] : memref<8x32xf32, #tpu.memory_space<vmem>>, vector<8x32xf32>
      tpu.vector_store %arg15[%c0_25, %c0_26], %47 {strides = array<i32>} : memref<8x32xf32, #tpu.memory_space<vmem>>, vector<8x32xf32>,
      %c0_27 = arith.constant 0 : index
      %c0_28 = arith.constant 0 : index
      %c0_29 = arith.constant 0 : index
      %49 = vector.load %arg3[%c0_27, %c0_28, %c0_29] : memref<8x8x32xf32, #tpu.memory_space<vmem>>, vector<8x8x32xf32>
      %50 = vector.shape_cast %47 : vector<8x32xf32> to vector<8x1x32xf32>
      "tpu.trace_start"() <{level = 10 : i32, message = "bqh,bkh->bqk"}> : () -> ()
      %cst_30 = arith.constant dense<0.000000e+00> : vector<8x1x8xf32>
      %51 = tpu.matmul %50, %49, %cst_30 {dimension_numbers = #tpu.dot_dimension_numbers<[2], [2], [1], [1], [0, 0, 0, 1, 1, 1], [0], [0]>} : vector<8x1x32xf32>, vector<8x8x32xf32>, vector<8x1x8xf32> -> vector<8x1x8xf32>
      "tpu.trace_stop"() : () -> ()
      %cst_31 = arith.constant dense<0xFF800000> : vector<8x1xf32>
      %52 = vector.multi_reduction <maximumf>, %51, %cst_31 [2] : vector<8x1x8xf32> to vector<8x1xf32>
      %53 = vector.shape_cast %52 : vector<8x1xf32> to vector<8x1x1xf32>
      %54 = vector.broadcast %53 : vector<8x1x1xf32> to vector<8x1x8xf32>
      %55 = arith.subf %51, %54 : vector<8x1x8xf32>
      %56 = math.exp %55 : vector<8x1x8xf32>
      %cst_32 = arith.constant dense<0.000000e+00> : vector<8x1xf32>
      %57 = vector.multi_reduction <add>, %56, %cst_32 [2] : vector<8x1x8xf32> to vector<8x1xf32>
      %58 = vector.shape_cast %57 : vector<8x1xf32> to vector<8x1x1xf32>
      %59 = tpu.reciprocal %58 {approx = true} : vector<8x1x1xf32> -> vector<8x1x1xf32>
      %60 = vector.broadcast %59 : vector<8x1x1xf32> to vector<8x1x8xf32>
      %61 = arith.mulf %56, %60 : vector<8x1x8xf32>
      %c0_33 = arith.constant 0 : index
      %c0_34 = arith.constant 0 : index
      %c0_35 = arith.constant 0 : index
      %62 = vector.load %arg16[%c0_33, %c0_34, %c0_35] : memref<8x1x8xf32, #tpu.memory_space<vmem>>, vector<8x1x8xf32>
      tpu.vector_store %arg16[%c0_33, %c0_34, %c0_35], %61 {strides = array<i32>} : memref<8x1x8xf32, #tpu.memory_space<vmem>>, vector<8x1x8xf32>,
      "tpu.trace_start"() <{level = 10 : i32, message = "bqk,bkh->bqh"}> : () -> ()
      %cst_36 = arith.constant dense<0.000000e+00> : vector<8x1x32xf32>
      %63 = tpu.matmul %61, %49, %cst_36 {dimension_numbers = #tpu.dot_dimension_numbers<[2], [1], [1], [2], [0, 0, 0, 1, 1, 2], [0], [0]>} : vector<8x1x8xf32>, vector<8x8x32xf32>, vector<8x1x32xf32> -> vector<8x1x32xf32>
      "tpu.trace_stop"() : () -> ()
      %cst_37 = arith.constant dense<0.000000e+00> : vector<8x32xf32>
      %64 = vector.multi_reduction <add>, %63, %cst_37 [1] : vector<8x1x32xf32> to vector<8x32xf32>
      %c0_38 = arith.constant 0 : index
      %c0_39 = arith.constant 0 : index
      %65 = vector.load %arg14[%c0_38, %c0_39] : memref<8x32xf32, #tpu.memory_space<vmem>>, vector<8x32xf32>
      tpu.vector_store %arg14[%c0_38, %c0_39], %64 {strides = array<i32>} : memref<8x32xf32, #tpu.memory_space<vmem>>, vector<8x32xf32>,
      %c0_40 = arith.constant 0 : index
      %c0_41 = arith.constant 0 : index
      %66 = vector.load %arg8[%c0_40, %c0_41] : memref<32x32xf32, #tpu.memory_space<vmem>>, vector<32x32xf32>
      %cst_42 = arith.constant dense<0.000000e+00> : vector<8x32xf32>
      %67 = tpu.matmul %47, %66, %cst_42 {dimension_numbers = #tpu.dot_dimension_numbers<[1], [0], [0], [1], [0, 0, 1, 1], [], []>} : vector<8x32xf32>, vector<32x32xf32>, vector<8x32xf32> -> vector<8x32xf32>
      %c0_43 = arith.constant 0 : index
      %c0_44 = arith.constant 0 : index
      %68 = vector.load %arg9[%c0_43, %c0_44] : memref<32x32xf32, #tpu.memory_space<vmem>>, vector<32x32xf32>
      %cst_45 = arith.constant dense<0.000000e+00> : vector<8x32xf32>
      %69 = tpu.matmul %64, %68, %cst_45 {dimension_numbers = #tpu.dot_dimension_numbers<[1], [0], [0], [1], [0, 0, 1, 1], [], []>} : vector<8x32xf32>, vector<32x32xf32>, vector<8x32xf32> -> vector<8x32xf32>
      %70 = arith.addf %67, %69 : vector<8x32xf32>
      %c0_46 = arith.constant 0 : index
      %c0_47 = arith.constant 0 : index
      %71 = vector.load %arg10[%c0_46, %c0_47] : memref<1x32xf32, #tpu.memory_space<vmem>>, vector<1x32xf32>
      %72 = vector.broadcast %71 : vector<1x32xf32> to vector<8x32xf32>
      %73 = arith.addf %70, %72 : vector<8x32xf32>
      %74 = math.tanh %73 : vector<8x32xf32>
      %c0_48 = arith.constant 0 : index
      %c0_49 = arith.constant 0 : index
      %75 = vector.load %arg17[%c0_48, %c0_49] : memref<8x32xf32, #tpu.memory_space<vmem>>, vector<8x32xf32>
      tpu.vector_store %arg17[%c0_48, %c0_49], %74 {strides = array<i32>} : memref<8x32xf32, #tpu.memory_space<vmem>>, vector<8x32xf32>,
    } else {
    }
    %c0 = arith.constant 0 : index
    %c0_1 = arith.constant 0 : index
    %3 = vector.load %arg17[%c0, %c0_1] : memref<8x32xf32, #tpu.memory_space<vmem>>, vector<8x32xf32>
    %c0_2 = arith.constant 0 : index
    %c0_3 = arith.constant 0 : index
    %4 = vector.load %arg11[%c0_2, %c0_3] : memref<32x128xf32, #tpu.memory_space<vmem>>, vector<32x128xf32>
    %cst = arith.constant dense<0.000000e+00> : vector<8x128xf32>
    %5 = tpu.matmul %3, %4, %cst {dimension_numbers = #tpu.dot_dimension_numbers<[1], [0], [0], [1], [0, 0, 1, 1], [], []>} : vector<8x32xf32>, vector<32x128xf32>, vector<8x128xf32> -> vector<8x128xf32>
    %c0_4 = arith.constant 0 : index
    %c0_5 = arith.constant 0 : index
    %6 = vector.load %arg12[%c0_4, %c0_5] : memref<1x128xf32, #tpu.memory_space<vmem>>, vector<1x128xf32>
    %7 = vector.broadcast %6 : vector<1x128xf32> to vector<8x128xf32>
    %8 = arith.addf %5, %7 : vector<8x128xf32>
    %c0_6 = arith.constant 0 : index
    %c0_7 = arith.constant 0 : index
    %9 = vector.load %arg13[%c0_6, %c0_7] : memref<8x128xf32, #tpu.memory_space<vmem>>, vector<8x128xf32>
    tpu.vector_store %arg13[%c0_6, %c0_7], %8 {strides = array<i32>} : memref<8x128xf32, #tpu.memory_space<vmem>>, vector<8x128xf32>,
    return
  }
  func.func @transform_0(%arg0: i32) -> (i32, i32) {
    %c0_i32 = arith.constant 0 : i32
    %c0_i32_0 = arith.constant 0 : i32
    %c0_i32_1 = arith.constant 0 : i32
    return %c0_i32, %c0_i32_0 : i32, i32
  }
  func.func @transform_1(%arg0: i32) -> (i32, i32) {
    %c0_i32 = arith.constant 0 : i32
    %c0_i32_0 = arith.constant 0 : i32
    %c0_i32_1 = arith.constant 0 : i32
    return %c0_i32, %c0_i32_0 : i32, i32
  }
  func.func @transform_2(%arg0: i32) -> (i32, i32, i32) {
    %c0_i32 = arith.constant 0 : i32
    %c0_i32_0 = arith.constant 0 : i32
    %c0_i32_1 = arith.constant 0 : i32
    %c0_i32_2 = arith.constant 0 : i32
    return %c0_i32, %c0_i32_0, %c0_i32_1 : i32, i32, i32
  }
  func.func @transform_3(%arg0: i32) -> (i32, i32) {
    %c0_i32 = arith.constant 0 : i32
    %c0_i32_0 = arith.constant 0 : i32
    %c0_i32_1 = arith.constant 0 : i32
    return %c0_i32, %c0_i32_0 : i32, i32
  }
  func.func @transform_4(%arg0: i32) -> (i32, i32) {
    %c0_i32 = arith.constant 0 : i32
    %c0_i32_0 = arith.constant 0 : i32
    %c0_i32_1 = arith.constant 0 : i32
    return %c0_i32, %c0_i32_0 : i32, i32
  }
  func.func @transform_5(%arg0: i32) -> (i32, i32) {
    %c0_i32 = arith.constant 0 : i32
    %c0_i32_0 = arith.constant 0 : i32
    %c0_i32_1 = arith.constant 0 : i32
    return %c0_i32, %c0_i32_0 : i32, i32
  }
  func.func @transform_6(%arg0: i32) -> (i32, i32) {
    %c0_i32 = arith.constant 0 : i32
    %c0_i32_0 = arith.constant 0 : i32
    %c0_i32_1 = arith.constant 0 : i32
    return %c0_i32, %c0_i32_0 : i32, i32
  }
  func.func @transform_7(%arg0: i32) -> (i32, i32) {
    %c0_i32 = arith.constant 0 : i32
    %c0_i32_0 = arith.constant 0 : i32
    %c0_i32_1 = arith.constant 0 : i32
    return %c0_i32, %c0_i32_0 : i32, i32
  }
  func.func @transform_8(%arg0: i32) -> (i32, i32) {
    %c0_i32 = arith.constant 0 : i32
    %c0_i32_0 = arith.constant 0 : i32
    %c0_i32_1 = arith.constant 0 : i32
    return %c0_i32, %c0_i32_0 : i32, i32
  }
  func.func @transform_9(%arg0: i32) -> (i32, i32) {
    %c0_i32 = arith.constant 0 : i32
    %c0_i32_0 = arith.constant 0 : i32
    %c0_i32_1 = arith.constant 0 : i32
    return %c0_i32, %c0_i32_0 : i32, i32
  }
  func.func @transform_10(%arg0: i32) -> (i32, i32) {
    %c0_i32 = arith.constant 0 : i32
    %c0_i32_0 = arith.constant 0 : i32
    return %c0_i32, %arg0 : i32, i32
  }
  func.func @transform_11(%arg0: i32) -> (i32, i32) {
    %c0_i32 = arith.constant 0 : i32
    %c0_i32_0 = arith.constant 0 : i32
    return %c0_i32, %arg0 : i32, i32
  }
  func.func @transform_12(%arg0: i32) -> (i32, i32) {
    %c0_i32 = arith.constant 0 : i32
    %c0_i32_0 = arith.constant 0 : i32
    return %c0_i32, %arg0 : i32, i32
  }
  func.func @transform_13(%arg0: i32) -> (i32, i32) {
    %c0_i32 = arith.constant 0 : i32
    %c0_i32_0 = arith.constant 0 : i32
    %c0_i32_1 = arith.constant 0 : i32
    return %c0_i32, %c0_i32_0 : i32, i32
  }
  func.func @transform_14(%arg0: i32) -> (i32, i32) {
    %c0_i32 = arith.constant 0 : i32
    %c0_i32_0 = arith.constant 0 : i32
    %c0_i32_1 = arith.constant 0 : i32
    return %c0_i32, %c0_i32_0 : i32, i32
  }
  func.func @transform_15(%arg0: i32) -> (i32, i32, i32) {
    %c0_i32 = arith.constant 0 : i32
    %c0_i32_0 = arith.constant 0 : i32
    %c0_i32_1 = arith.constant 0 : i32
    %c0_i32_2 = arith.constant 0 : i32
    return %c0_i32, %c0_i32_0, %c0_i32_1 : i32, i32, i32
  }
}

</mosaic_0001>

<llo_original>
// kernel: tpu_custom_call.1
$region0: #{tpu_custom_call.1}
  #allocation0 [shape = 'u32[]', space=smem, size = 0x4, offset = 0x4, fixed_abs, tag = 'smem constant byte address 0x4 - core index']
  #allocation1 [shape = 'u32[144,128]{1,0:T(1,128)}', space=vmem, size = 0x12000, scoped, tag = 'internal scratch']
  #allocation2 [shape = 'f32[8,32]{1,0:T(8,128)}', space=vmem, size = 0x1000, scoped, tag = 'scratch operand']
  %s0 = inlined_call_operand.hbm [shape: f32[8,32], index: 0, kind: input, shape index: {}]
  %s1 = inlined_call_operand.hbm [shape: f32[8,32], index: 1, kind: input, shape index: {}]
  %s2 = inlined_call_operand.hbm [shape: f32[8,8,32], index: 2, kind: input, shape index: {}]
  %s3 = inlined_call_operand.hbm [shape: f32[32,384], index: 3, kind: input, shape index: {}]
  %s4 = inlined_call_operand.hbm [shape: f32[32,384], index: 4, kind: input, shape index: {}]
  %s5 = inlined_call_operand.vmem [shape: f32[1,384], index: 5, kind: input, shape index: {}]
  %s6 = inlined_call_operand.vmem [shape: f32[1,384], index: 6, kind: input, shape index: {}]
  %s7 = inlined_call_operand.hbm [shape: f32[32,32], index: 7, kind: input, shape index: {}]
  %s8 = inlined_call_operand.hbm [shape: f32[32,32], index: 8, kind: input, shape index: {}]
  %s9 = inlined_call_operand.vmem [shape: f32[1,32], index: 9, kind: input, shape index: {}]
  %s10 = inlined_call_operand.hbm [shape: f32[32,128], index: 10, kind: input, shape index: {}]
  %s11 = inlined_call_operand.vmem [shape: f32[1,128], index: 11, kind: input, shape index: {}]
  %s12 = inlined_call_operand.hbm [shape: f32[8,128], index: 12, kind: output, shape index: {0}]
  %s13 = inlined_call_operand.hbm [shape: f32[8,32], index: 13, kind: output, shape index: {1}]
  %s14 = inlined_call_operand.hbm [shape: f32[8,32], index: 14, kind: output, shape index: {2}]
  %s15 = inlined_call_operand.hbm [shape: f32[8,1,8], index: 15, kind: output, shape index: {3}]
  %16 = xla_tuple %s12, %s13, %s14, %s15
  %s17 = sld [smem:[#allocation0]]
  $region118: #{tpu_custom_call.1} parent=0
    _
  %s19 = ssub.s32 1, %s17
  %s20 = scalar_select 0, %s19, %s17
  $region1: #{tpu_custom_call.1} parent=0
    #allocation3 [shape = 'u8[4096]{0}', space=vmem, size = 0x1000, scoped, tag = 'input window, operand 0, single buffered']
    #allocation4 [shape = 's32[1]{0}', space=sflag, size = 0x4, scoped, tag = 'scoped memory for tpu_custom_call.1']
    #allocation5 [shape = 's32[1]{0}', space=sflag, size = 0x4, scoped, tag = 'scoped memory for tpu_custom_call.1']
    #allocation6 [shape = 'u8[4096]{0}', space=vmem, size = 0x1000, scoped, tag = 'input window, operand 1, single buffered']
    #allocation7 [shape = 's32[1]{0}', space=sflag, size = 0x4, scoped, tag = 'scoped memory for tpu_custom_call.1']
    #allocation8 [shape = 'u8[32768]{0}', space=vmem, size = 0x8000, scoped, tag = 'input window, operand 2, single buffered']
    #allocation9 [shape = 'u8[49152]{0}', space=vmem, size = 0xc000, scoped, tag = 'input window, operand 3, single buffered']
    #allocation10 [shape = 's32[1]{0}', space=sflag, size = 0x4, scoped, tag = 'scoped memory for tpu_custom_call.1']
    #allocation11 [shape = 'u8[49152]{0}', space=vmem, size = 0xc000, scoped, tag = 'input window, operand 4, single buffered']
    #allocation12 [shape = 'u8[16384]{0}', space=vmem, size = 0x4000, scoped, tag = 'input window, operand 7, single buffered']
    #allocation13 [shape = 's32[1]{0}', space=sflag, size = 0x4, scoped, tag = 'scoped memory for tpu_custom_call.1']
    #allocation14 [shape = 'u8[16384]{0}', space=vmem, size = 0x4000, scoped, tag = 'input window, operand 8, single buffered']
    #allocation15 [shape = 'u8[16384]{0}', space=vmem, size = 0x4000, scoped, tag = 'input window, operand 10, single buffered']
    #allocation16 [shape = 's32[1]{0}', space=sflag, size = 0x4, scoped, tag = 'scoped memory for tpu_custom_call.1']
    #allocation17 [shape = 'u8[4096]{0}', space=vmem, size = 0x1000, scoped, tag = 'output window, operand 0, single buffered']
    #allocation18 [shape = 'u8[4096]{0}', space=vmem, size = 0x1000, scoped, tag = 'output window, operand 1, single buffered']
    #allocation19 [shape = 's32[1]{0}', space=sflag, size = 0x4, scoped, tag = 'scoped memory for tpu_custom_call.1']
    #allocation20 [shape = 'u8[4096]{0}', space=vmem, size = 0x1000, scoped, tag = 'output window, operand 2, single buffered']
    #allocation21 [shape = 'u8[4096]{0}', space=vmem, size = 0x1000, scoped, tag = 'output window, operand 3, single buffered']
    #allocation22 [shape = 's32[1]{0}', space=sflag, size = 0x4, scoped, tag = 'scoped memory for tpu_custom_call.1']
    %21 = vsyncpa [#allocation4], 0
    %22 = vsyncpa [#allocation7], 0
    %23 = vsyncpa [#allocation10], 0
    %24 = vsyncpa [#allocation13], 0
    %25 = vsyncpa [#allocation16], 0
    %26 = vsyncpa [#allocation5], 0
    %27 = vsyncpa [#allocation19], 0
    %28 = vsyncpa [#allocation22], 0
    // Predicated region
    $region2: #{tpu_custom_call.1} parent=1 // pred_check
      _
    $region3: #{tpu_custom_call.1} parent=1 // pred_check_branch
      %30 = sbr.rel (0) target = $region5
    $region4: #{tpu_custom_call.1} parent=1 // pred_region
      %s32 = ssub.s32 128, 128
      %33 = vsyncadd [#allocation4], %s32
      %s35 = sshll.u32 [#allocation3], 4
      %s36 = int_to_ptr.vmem [resolvable:$true] %s35
      %38 = dma.hbm_to_vmem [thread:$0]  %s0, 128, %s36, [#allocation4]
    $region5: #{tpu_custom_call.1} parent=1 // pred_fallthru
      _
    // Predicated region
    $region6: #{tpu_custom_call.1} parent=1 // pred_check
      _
    $region7: #{tpu_custom_call.1} parent=1 // pred_check_branch
      %40 = sbr.rel (0) target = $region9
    $region8: #{tpu_custom_call.1} parent=1 // pred_region
      %s42 = ssub.s32 128, 128
      %43 = vsyncadd [#allocation7], %s42
      %s45 = sshll.u32 [#allocation6], 4
      %s46 = int_to_ptr.vmem [resolvable:$true] %s45
      %48 = dma.hbm_to_vmem [thread:$0]  %s1, 128, %s46, [#allocation7]
    $region9: #{tpu_custom_call.1} parent=1 // pred_fallthru
      _
    // Predicated region
    $region10: #{tpu_custom_call.1} parent=1 // pred_check
      _
    $region11: #{tpu_custom_call.1} parent=1 // pred_check_branch
      %50 = sbr.rel (0) target = $region13
    $region12: #{tpu_custom_call.1} parent=1 // pred_region
      %s52 = ssub.s32 1024, 1024
      %53 = vsyncadd [#allocation7], %s52
      %s54 = sshll.u32 [#allocation8], 4
      %s55 = int_to_ptr.vmem [resolvable:$true] %s54
      %60 = dma.hbm_to_vmem [thread:$0]  %s2, 1024, %s55, [#allocation7], 128, 128, 8
    $region13: #{tpu_custom_call.1} parent=1 // pred_fallthru
      _
    // Predicated region
    $region14: #{tpu_custom_call.1} parent=1 // pred_check
      _
    $region15: #{tpu_custom_call.1} parent=1 // pred_check_branch
      %62 = sbr.rel (0) target = $region17
    $region16: #{tpu_custom_call.1} parent=1 // pred_region
      %s64 = ssub.s32 1536, 1536
      %65 = vsyncadd [#allocation10], %s64
      %s66 = sshll.u32 [#allocation9], 4
      %s67 = int_to_ptr.vmem [resolvable:$true] %s66
      %72 = dma.hbm_to_vmem [thread:$0]  %s3, 1536, %s67, [#allocation10], 384, 384, 24
    $region17: #{tpu_custom_call.1} parent=1 // pred_fallthru
      _
    // Predicated region
    $region18: #{tpu_custom_call.1} parent=1 // pred_check
      _
    $region19: #{tpu_custom_call.1} parent=1 // pred_check_branch
      %74 = sbr.rel (0) target = $region21
    $region20: #{tpu_custom_call.1} parent=1 // pred_region
      %s76 = ssub.s32 1536, 1536
      %77 = vsyncadd [#allocation10], %s76
      %s78 = sshll.u32 [#allocation11], 4
      %s79 = int_to_ptr.vmem [resolvable:$true] %s78
      %84 = dma.hbm_to_vmem [thread:$0]  %s4, 1536, %s79, [#allocation10], 384, 384, 24
    $region21: #{tpu_custom_call.1} parent=1 // pred_fallthru
      _
    // Predicated region
    $region22: #{tpu_custom_call.1} parent=1 // pred_check
      _
    $region23: #{tpu_custom_call.1} parent=1 // pred_check_branch
      %86 = sbr.rel (0) target = $region25
    $region24: #{tpu_custom_call.1} parent=1 // pred_region
      _
    $region25: #{tpu_custom_call.1} parent=1 // pred_fallthru
      _
    // Predicated region
    $region26: #{tpu_custom_call.1} parent=1 // pred_check
      _
    $region27: #{tpu_custom_call.1} parent=1 // pred_check_branch
      %88 = sbr.rel (0) target = $region29
    $region28: #{tpu_custom_call.1} parent=1 // pred_region
      _
    $region29: #{tpu_custom_call.1} parent=1 // pred_fallthru
      _
    // Predicated region
    $region30: #{tpu_custom_call.1} parent=1 // pred_check
      _
    $region31: #{tpu_custom_call.1} parent=1 // pred_check_branch
      %90 = sbr.rel (0) target = $region33
    $region32: #{tpu_custom_call.1} parent=1 // pred_region
      %s92 = ssub.s32 512, 512
      %93 = vsyncadd [#allocation13], %s92
      %s94 = sshll.u32 [#allocation12], 4
      %s95 = int_to_ptr.vmem [resolvable:$true] %s94
      %100 = dma.hbm_to_vmem [thread:$0]  %s7, 512, %s95, [#allocation13], 128, 128, 8
    $region33: #{tpu_custom_call.1} parent=1 // pred_fallthru
      _
    // Predicated region
    $region34: #{tpu_custom_call.1} parent=1 // pred_check
      _
    $region35: #{tpu_custom_call.1} parent=1 // pred_check_branch
      %102 = sbr.rel (0) target = $region37
    $region36: #{tpu_custom_call.1} parent=1 // pred_region
      %s104 = ssub.s32 512, 512
      %105 = vsyncadd [#allocation13], %s104
      %s106 = sshll.u32 [#allocation14], 4
      %s107 = int_to_ptr.vmem [resolvable:$true] %s106
      %112 = dma.hbm_to_vmem [thread:$0]  %s8, 512, %s107, [#allocation13], 128, 128, 8
    $region37: #{tpu_custom_call.1} parent=1 // pred_fallthru
      _
    // Predicated region
    $region38: #{tpu_custom_call.1} parent=1 // pred_check
      _
    $region39: #{tpu_custom_call.1} parent=1 // pred_check_branch
      %114 = sbr.rel (0) target = $region41
    $region40: #{tpu_custom_call.1} parent=1 // pred_region
      _
    $region41: #{tpu_custom_call.1} parent=1 // pred_fallthru
      _
    // Predicated region
    $region42: #{tpu_custom_call.1} parent=1 // pred_check
      _
    $region43: #{tpu_custom_call.1} parent=1 // pred_check_branch
      %116 = sbr.rel (0) target = $region45
    $region44: #{tpu_custom_call.1} parent=1 // pred_region
      %s118 = ssub.s32 512, 512
      %119 = vsyncadd [#allocation16], %s118
      %s120 = sshll.u32 [#allocation15], 4
      %s121 = int_to_ptr.vmem [resolvable:$true] %s120
      %126 = dma.hbm_to_vmem [thread:$0]  %s10, 512, %s121, [#allocation16], 128, 128, 8
    $region45: #{tpu_custom_call.1} parent=1 // pred_fallthru
      _
    // Predicated region
    $region46: #{tpu_custom_call.1} parent=1 // pred_check
      _
    $region47: #{tpu_custom_call.1} parent=1 // pred_check_branch
      %128 = sbr.rel (0) target = $region49
    $region48: #{tpu_custom_call.1} parent=1 // pred_region
      _
    $region49: #{tpu_custom_call.1} parent=1 // pred_fallthru
      _
    // Predicated region
    $region50: #{tpu_custom_call.1} parent=1 // pred_check
      _
    $region51: #{tpu_custom_call.1} parent=1 // pred_check_branch
      %130 = sbr.rel (0) target = $region53
    $region52: #{tpu_custom_call.1} parent=1 // pred_region
      %131 = dma.done [#allocation4], 128
    $region53: #{tpu_custom_call.1} parent=1 // pred_fallthru
      _
    // Predicated region
    $region54: #{tpu_custom_call.1} parent=1 // pred_check
      _
    $region55: #{tpu_custom_call.1} parent=1 // pred_check_branch
      %133 = sbr.rel (0) target = $region57
    $region56: #{tpu_custom_call.1} parent=1 // pred_region
      %134 = dma.done [#allocation7], 128
    $region57: #{tpu_custom_call.1} parent=1 // pred_fallthru
      _
    // Predicated region
    $region58: #{tpu_custom_call.1} parent=1 // pred_check
      _
    $region59: #{tpu_custom_call.1} parent=1 // pred_check_branch
      %136 = sbr.rel (0) target = $region61
    $region60: #{tpu_custom_call.1} parent=1 // pred_region
      %137 = dma.done [#allocation7], 1024
    $region61: #{tpu_custom_call.1} parent=1 // pred_fallthru
      _
    // Predicated region
    $region62: #{tpu_custom_call.1} parent=1 // pred_check
      _
    $region63: #{tpu_custom_call.1} parent=1 // pred_check_branch
      %139 = sbr.rel (0) target = $region65
    $region64: #{tpu_custom_call.1} parent=1 // pred_region
      %140 = dma.done [#allocation10], 1536
    $region65: #{tpu_custom_call.1} parent=1 // pred_fallthru
      _
    // Predicated region
    $region66: #{tpu_custom_call.1} parent=1 // pred_check
      _
    $region67: #{tpu_custom_call.1} parent=1 // pred_check_branch
      %142 = sbr.rel (0) target = $region69
    $region68: #{tpu_custom_call.1} parent=1 // pred_region
      %143 = dma.done [#allocation10], 1536
    $region69: #{tpu_custom_call.1} parent=1 // pred_fallthru
      _
    // Predicated region
    $region70: #{tpu_custom_call.1} parent=1 // pred_check
      _
    $region71: #{tpu_custom_call.1} parent=1 // pred_check_branch
      %145 = sbr.rel (0) target = $region73
    $region72: #{tpu_custom_call.1} parent=1 // pred_region
      %146 = dma.done [#allocation13], 512
    $region73: #{tpu_custom_call.1} parent=1 // pred_fallthru
      _
    // Predicated region
    $region74: #{tpu_custom_call.1} parent=1 // pred_check
      _
    $region75: #{tpu_custom_call.1} parent=1 // pred_check_branch
      %148 = sbr.rel (0) target = $region77
    $region76: #{tpu_custom_call.1} parent=1 // pred_region
      %149 = dma.done [#allocation13], 512
    $region77: #{tpu_custom_call.1} parent=1 // pred_fallthru
      _
    // Predicated region
    $region78: #{tpu_custom_call.1} parent=1 // pred_check
      _
    $region79: #{tpu_custom_call.1} parent=1 // pred_check_branch
      %151 = sbr.rel (0) target = $region81
    $region80: #{tpu_custom_call.1} parent=1 // pred_region
      %152 = dma.done [#allocation16], 512
    $region81: #{tpu_custom_call.1} parent=1 // pred_fallthru
      _
    %p153 = scmp.eq.s32.totalorder 0, 0
    // Predicated region
    $region82: #{tpu_custom_call.1} parent=1 // pred_check
      %p154 = pneg %p153
    $region83: #{tpu_custom_call.1} parent=1 // pred_check_branch
      %156 = sbr.rel (%p154) target = $region85
    $region84: #{tpu_custom_call.1} parent=1 // pred_region
      %v157 = vld [vmem:[#allocation3] sm:$0xff]
      %v158 = vld [vmem:[#allocation6] sm:$0xff]
      %v159 = vld [vmem:[#allocation9] sm:$0xff]
      %v160 = vld [vmem:[#allocation9 + $0x8] sm:$0xff]
      %v161 = vld [vmem:[#allocation9 + $0x10] sm:$0xff]
      %v162 = vld [vmem:[#allocation9 + $0x18] sm:$0xff]
      %v163 = vld [vmem:[#allocation9 + $0x20] sm:$0xff]
      %v164 = vld [vmem:[#allocation9 + $0x28] sm:$0xff]
      %v165 = vld [vmem:[#allocation9 + $0x30] sm:$0xff]
      %v166 = vld [vmem:[#allocation9 + $0x38] sm:$0xff]
      %v167 = vld [vmem:[#allocation9 + $0x40] sm:$0xff]
      %v168 = vld [vmem:[#allocation9 + $0x48] sm:$0xff]
      %v169 = vld [vmem:[#allocation9 + $0x50] sm:$0xff]
      %v170 = vld [vmem:[#allocation9 + $0x58] sm:$0xff]
      %v171 = vld [vmem:[%s5] sm:$0x7]
      %v173 = vlaneseq
      %v174 = vshrl.u32 %v173, 7
      %v175 = vsub.s32 0, %v174
      %v176 = vrot.slane %v171, %v175
      %v177 = vlaneseq
      %v178 = vshrl.u32 %v177, 7
      %v179 = vsub.s32 1, %v178
      %v180 = vrot.slane %v171, %v179
      %v181 = vlaneseq
      %v182 = vshrl.u32 %v181, 7
      %v183 = vsub.s32 2, %v182
      %v184 = vrot.slane %v171, %v183
      %vm188 = vcmask 261120
      %v190 = vsel %vm188, %v157, 0
      %192 = vmatprep.subr.mxu0 0.0
      %193 = vmatpush1.msra.mxu0 0.0
      %194 = vmatprep.subr.mxu0 0.0
      %195 = vmatpush1.msra.mxu0 0.0
      %196 = vmatprep.subr.mxu0 0.0
      %197 = vmatpush1.msra.mxu0 0.0
      %198 = vmatprep.subr.mxu0 0.0
      %199 = vmatpush1.msra.mxu0 0.0
      %200 = vmatprep.subr.mxu0 0.0
      %201 = vmatpush1.msra.mxu0 0.0
      %202 = vmatprep.subr.mxu0 0.0
      %203 = vmatpush1.msra.mxu0 0.0
      %204 = vmatprep.subr.mxu0 0.0
      %205 = vmatpush1.msra.mxu0 0.0
      %206 = vmatprep.subr.mxu0 0.0
      %207 = vmatpush1.msra.mxu0 0.0
      %208 = vmatprep.subr.mxu0 0.0
      %209 = vmatpush1.msra.mxu0 0.0
      %210 = vmatprep.subr.mxu0 0.0
      %211 = vmatpush1.msra.mxu0 0.0
      %212 = vmatprep.subr.mxu0 0.0
      %213 = vmatpush1.msra.mxu0 0.0
      %214 = vmatprep.subr.mxu0 0.0
      %215 = vmatpush1.msra.mxu0 0.0
      %216 = vmatprep.subr.mxu0 %v169
      %217 = vmatpush1.msra.mxu0 %v168
      %218 = vmatprep.subr.mxu0 %v166
      %219 = vmatpush1.msra.mxu0 %v165
      %220 = vmatprep.subr.mxu0 %v163
      %221 = vmatpush1.msra.mxu0 %v162
      %222 = vmatprep.subr.mxu0 %v160
      %223 = vmatpush1.msra.mxu0 %v159
      %224 = vmatprep.subr.mxu0 0.0
      %225 = vmatpush2.msra.mxu0 0.0
      %226 = vmatprep.subr.mxu0 0.0
      %227 = vmatpush2.msra.mxu0 0.0
      %228 = vmatprep.subr.mxu0 0.0
      %229 = vmatpush2.msra.mxu0 0.0
      %230 = vmatprep.subr.mxu0 0.0
      %231 = vmatpush2.msra.mxu0 0.0
      %232 = vmatprep.subr.mxu0 0.0
      %233 = vmatpush2.msra.mxu0 0.0
      %234 = vmatprep.subr.mxu0 0.0
      %235 = vmatpush2.msra.mxu0 0.0
      %236 = vmatprep.subr.mxu0 0.0
      %237 = vmatpush2.msra.mxu0 0.0
      %238 = vmatprep.subr.mxu0 0.0
      %239 = vmatpush2.msra.mxu0 0.0
      %240 = vmatprep.subr.mxu0 0.0
      %241 = vmatpush2.msra.mxu0 0.0
      %242 = vmatprep.subr.mxu0 0.0
      %243 = vmatpush2.msra.mxu0 0.0
      %244 = vmatprep.subr.mxu0 0.0
      %245 = vmatpush2.msra.mxu0 0.0
      %246 = vmatprep.subr.mxu0 0.0
      %247 = vmatpush2.msra.mxu0 0.0
      %248 = vmatprep.subr.mxu0 0.0
      %249 = vmatpush2.msra.mxu0 0.0
      %250 = vmatprep.subr.mxu0 0.0
      %251 = vmatpush2.msra.mxu0 0.0
      %252 = vmatprep.subr.mxu0 0.0
      %253 = vmatpush2.msra.mxu0 0.0
      %254 = vmatprep.subr.mxu0 0.0
      %255 = vmatpush2.msra.mxu0 0.0
      %256 = vmatprep.mubr.f32.mxu0 0.0
      %257 = vmatmul.mubr.f32.gmra.mxu0 %v190
      %v258 = vpop.f32.mrf.mxu0
      %v259 = vadd.f32 %v176, %v258
      %v260 = vpop.f32.mrf.mxu0
      %v261 = vadd.f32 %v180, %v260
      %262 = vdwg.mxu0
      %263 = vmatprep.subr.mxu0 0.0
      %264 = vmatpush1.msra.mxu0 0.0
      %265 = vmatprep.subr.mxu0 0.0
      %266 = vmatpush1.msra.mxu0 0.0
      %267 = vmatprep.subr.mxu0 0.0
      %268 = vmatpush1.msra.mxu0 0.0
      %269 = vmatprep.subr.mxu0 0.0
      %270 = vmatpush1.msra.mxu0 0.0
      %271 = vmatprep.subr.mxu0 0.0
      %272 = vmatpush1.msra.mxu0 0.0
      %273 = vmatprep.subr.mxu0 0.0
      %274 = vmatpush1.msra.mxu0 0.0
      %275 = vmatprep.subr.mxu0 0.0
      %276 = vmatpush1.msra.mxu0 0.0
      %277 = vmatprep.subr.mxu0 0.0
      %278 = vmatpush1.msra.mxu0 0.0
      %279 = vmatprep.subr.mxu0 0.0
      %280 = vmatpush1.msra.mxu0 0.0
      %281 = vmatprep.subr.mxu0 0.0
      %282 = vmatpush1.msra.mxu0 0.0
      %283 = vmatprep.subr.mxu0 0.0
      %284 = vmatpush1.msra.mxu0 0.0
      %285 = vmatprep.subr.mxu0 0.0
      %286 = vmatpush1.msra.mxu0 0.0
      %287 = vmatprep.subr.mxu0 0.0
      %288 = vmatpush1.msra.mxu0 %v170
      %289 = vmatprep.subr.mxu0 0.0
      %290 = vmatpush1.msra.mxu0 %v167
      %291 = vmatprep.subr.mxu0 0.0
      %292 = vmatpush1.msra.mxu0 %v164
      %293 = vmatprep.subr.mxu0 0.0
      %294 = vmatpush1.msra.mxu0 %v161
      %295 = vmatprep.subr.mxu0 0.0
      %296 = vmatpush2.msra.mxu0 0.0
      %297 = vmatprep.subr.mxu0 0.0
      %298 = vmatpush2.msra.mxu0 0.0
      %299 = vmatprep.subr.mxu0 0.0
      %300 = vmatpush2.msra.mxu0 0.0
      %301 = vmatprep.subr.mxu0 0.0
      %302 = vmatpush2.msra.mxu0 0.0
      %303 = vmatprep.subr.mxu0 0.0
      %304 = vmatpush2.msra.mxu0 0.0
      %305 = vmatprep.subr.mxu0 0.0
      %306 = vmatpush2.msra.mxu0 0.0
      %307 = vmatprep.subr.mxu0 0.0
      %308 = vmatpush2.msra.mxu0 0.0
      %309 = vmatprep.subr.mxu0 0.0
      %310 = vmatpush2.msra.mxu0 0.0
      %311 = vmatprep.subr.mxu0 0.0
      %312 = vmatpush2.msra.mxu0 0.0
      %313 = vmatprep.subr.mxu0 0.0
      %314 = vmatpush2.msra.mxu0 0.0
      %315 = vmatprep.subr.mxu0 0.0
      %316 = vmatpush2.msra.mxu0 0.0
      %317 = vmatprep.subr.mxu0 0.0
      %318 = vmatpush2.msra.mxu0 0.0
      %319 = vmatprep.subr.mxu0 0.0
      %320 = vmatpush2.msra.mxu0 0.0
      %321 = vmatprep.subr.mxu0 0.0
      %322 = vmatpush2.msra.mxu0 0.0
      %323 = vmatprep.subr.mxu0 0.0
      %324 = vmatpush2.msra.mxu0 0.0
      %325 = vmatprep.subr.mxu0 0.0
      %326 = vmatpush2.msra.mxu0 0.0
      %327 = vmatprep.mubr.f32.mxu0 0.0
      %328 = vmatmul.mubr.f32.gmra.mxu0 %v190
      %v329 = vpop.f32.mrf.mxu0
      %v330 = vadd.f32 %v184, %v329
      %v331 = vpop.f32.mrf.mxu0
      %332 = vdwg.mxu0
      %v333 = vld [vmem:[#allocation11] sm:$0xff]
      %v334 = vld [vmem:[#allocation11 + $0x8] sm:$0xff]
      %v335 = vld [vmem:[#allocation11 + $0x10] sm:$0xff]
      %v336 = vld [vmem:[#allocation11 + $0x18] sm:$0xff]
      %v337 = vld [vmem:[#allocation11 + $0x20] sm:$0xff]
      %v338 = vld [vmem:[#allocation11 + $0x28] sm:$0xff]
      %v339 = vld [vmem:[#allocation11 + $0x30] sm:$0xff]
      %v340 = vld [vmem:[#allocation11 + $0x38] sm:$0xff]
      %v341 = vld [vmem:[#allocation11 + $0x40] sm:$0xff]
      %v342 = vld [vmem:[#allocation11 + $0x48] sm:$0xff]
      %v343 = vld [vmem:[#allocation11 + $0x50] sm:$0xff]
      %v344 = vld [vmem:[#allocation11 + $0x58] sm:$0xff]
      %v345 = vld [vmem:[%s6] sm:$0x7]
      %v347 = vlaneseq
      %v348 = vshrl.u32 %v347, 7
      %v349 = vsub.s32 0, %v348
      %v350 = vrot.slane %v345, %v349
      %v351 = vlaneseq
      %v352 = vshrl.u32 %v351, 7
      %v353 = vsub.s32 1, %v352
      %v354 = vrot.slane %v345, %v353
      %v355 = vlaneseq
      %v356 = vshrl.u32 %v355, 7
      %v357 = vsub.s32 2, %v356
      %v358 = vrot.slane %v345, %v357
      %v363 = vsel %vm188, %v158, 0
      %365 = vmatprep.subr.mxu0 0.0
      %366 = vmatpush1.msra.mxu0 0.0
      %367 = vmatprep.subr.mxu0 0.0
      %368 = vmatpush1.msra.mxu0 0.0
      %369 = vmatprep.subr.mxu0 0.0
      %370 = vmatpush1.msra.mxu0 0.0
      %371 = vmatprep.subr.mxu0 0.0
      %372 = vmatpush1.msra.mxu0 0.0
      %373 = vmatprep.subr.mxu0 0.0
      %374 = vmatpush1.msra.mxu0 0.0
      %375 = vmatprep.subr.mxu0 0.0
      %376 = vmatpush1.msra.mxu0 0.0
      %377 = vmatprep.subr.mxu0 0.0
      %378 = vmatpush1.msra.mxu0 0.0
      %379 = vmatprep.subr.mxu0 0.0
      %380 = vmatpush1.msra.mxu0 0.0
      %381 = vmatprep.subr.mxu0 0.0
      %382 = vmatpush1.msra.mxu0 0.0
      %383 = vmatprep.subr.mxu0 0.0
      %384 = vmatpush1.msra.mxu0 0.0
      %385 = vmatprep.subr.mxu0 0.0
      %386 = vmatpush1.msra.mxu0 0.0
      %387 = vmatprep.subr.mxu0 0.0
      %388 = vmatpush1.msra.mxu0 0.0
      %389 = vmatprep.subr.mxu0 %v343
      %390 = vmatpush1.msra.mxu0 %v342
      %391 = vmatprep.subr.mxu0 %v340
      %392 = vmatpush1.msra.mxu0 %v339
      %393 = vmatprep.subr.mxu0 %v337
      %394 = vmatpush1.msra.mxu0 %v336
      %395 = vmatprep.subr.mxu0 %v334
      %396 = vmatpush1.msra.mxu0 %v333
      %397 = vmatprep.subr.mxu0 0.0
      %398 = vmatpush2.msra.mxu0 0.0
      %399 = vmatprep.subr.mxu0 0.0
      %400 = vmatpush2.msra.mxu0 0.0
      %401 = vmatprep.subr.mxu0 0.0
      %402 = vmatpush2.msra.mxu0 0.0
      %403 = vmatprep.subr.mxu0 0.0
      %404 = vmatpush2.msra.mxu0 0.0
      %405 = vmatprep.subr.mxu0 0.0
      %406 = vmatpush2.msra.mxu0 0.0
      %407 = vmatprep.subr.mxu0 0.0
      %408 = vmatpush2.msra.mxu0 0.0
      %409 = vmatprep.subr.mxu0 0.0
      %410 = vmatpush2.msra.mxu0 0.0
      %411 = vmatprep.subr.mxu0 0.0
      %412 = vmatpush2.msra.mxu0 0.0
      %413 = vmatprep.subr.mxu0 0.0
      %414 = vmatpush2.msra.mxu0 0.0
      %415 = vmatprep.subr.mxu0 0.0
      %416 = vmatpush2.msra.mxu0 0.0
      %417 = vmatprep.subr.mxu0 0.0
      %418 = vmatpush2.msra.mxu0 0.0
      %419 = vmatprep.subr.mxu0 0.0
      %420 = vmatpush2.msra.mxu0 0.0
      %421 = vmatprep.subr.mxu0 0.0
      %422 = vmatpush2.msra.mxu0 0.0
      %423 = vmatprep.subr.mxu0 0.0
      %424 = vmatpush2.msra.mxu0 0.0
      %425 = vmatprep.subr.mxu0 0.0
      %426 = vmatpush2.msra.mxu0 0.0
      %427 = vmatprep.subr.mxu0 0.0
      %428 = vmatpush2.msra.mxu0 0.0
      %429 = vmatprep.mubr.f32.mxu0 0.0
      %430 = vmatmul.mubr.f32.gmra.mxu0 %v363
      %v431 = vpop.f32.mrf.mxu0
      %v432 = vadd.f32 %v350, %v431
      %v433 = vpop.f32.mrf.mxu0
      %v434 = vadd.f32 %v354, %v433
      %435 = vdwg.mxu0
      %436 = vmatprep.subr.mxu0 0.0
      %437 = vmatpush1.msra.mxu0 0.0
      %438 = vmatprep.subr.mxu0 0.0
      %439 = vmatpush1.msra.mxu0 0.0
      %440 = vmatprep.subr.mxu0 0.0
      %441 = vmatpush1.msra.mxu0 0.0
      %442 = vmatprep.subr.mxu0 0.0
      %443 = vmatpush1.msra.mxu0 0.0
      %444 = vmatprep.subr.mxu0 0.0
      %445 = vmatpush1.msra.mxu0 0.0
      %446 = vmatprep.subr.mxu0 0.0
      %447 = vmatpush1.msra.mxu0 0.0
      %448 = vmatprep.subr.mxu0 0.0
      %449 = vmatpush1.msra.mxu0 0.0
      %450 = vmatprep.subr.mxu0 0.0
      %451 = vmatpush1.msra.mxu0 0.0
      %452 = vmatprep.subr.mxu0 0.0
      %453 = vmatpush1.msra.mxu0 0.0
      %454 = vmatprep.subr.mxu0 0.0
      %455 = vmatpush1.msra.mxu0 0.0
      %456 = vmatprep.subr.mxu0 0.0
      %457 = vmatpush1.msra.mxu0 0.0
      %458 = vmatprep.subr.mxu0 0.0
      %459 = vmatpush1.msra.mxu0 0.0
      %460 = vmatprep.subr.mxu0 0.0
      %461 = vmatpush1.msra.mxu0 %v344
      %462 = vmatprep.subr.mxu0 0.0
      %463 = vmatpush1.msra.mxu0 %v341
      %464 = vmatprep.subr.mxu0 0.0
      %465 = vmatpush1.msra.mxu0 %v338
      %466 = vmatprep.subr.mxu0 0.0
      %467 = vmatpush1.msra.mxu0 %v335
      %468 = vmatprep.subr.mxu0 0.0
      %469 = vmatpush2.msra.mxu0 0.0
      %470 = vmatprep.subr.mxu0 0.0
      %471 = vmatpush2.msra.mxu0 0.0
      %472 = vmatprep.subr.mxu0 0.0
      %473 = vmatpush2.msra.mxu0 0.0
      %474 = vmatprep.subr.mxu0 0.0
      %475 = vmatpush2.msra.mxu0 0.0
      %476 = vmatprep.subr.mxu0 0.0
      %477 = vmatpush2.msra.mxu0 0.0
      %478 = vmatprep.subr.mxu0 0.0
      %479 = vmatpush2.msra.mxu0 0.0
      %480 = vmatprep.subr.mxu0 0.0
      %481 = vmatpush2.msra.mxu0 0.0
      %482 = vmatprep.subr.mxu0 0.0
      %483 = vmatpush2.msra.mxu0 0.0
      %484 = vmatprep.subr.mxu0 0.0
      %485 = vmatpush2.msra.mxu0 0.0
      %486 = vmatprep.subr.mxu0 0.0
      %487 = vmatpush2.msra.mxu0 0.0
      %488 = vmatprep.subr.mxu0 0.0
      %489 = vmatpush2.msra.mxu0 0.0
      %490 = vmatprep.subr.mxu0 0.0
      %491 = vmatpush2.msra.mxu0 0.0
      %492 = vmatprep.subr.mxu0 0.0
      %493 = vmatpush2.msra.mxu0 0.0
      %494 = vmatprep.subr.mxu0 0.0
      %495 = vmatpush2.msra.mxu0 0.0
      %496 = vmatprep.subr.mxu0 0.0
      %497 = vmatpush2.msra.mxu0 0.0
      %498 = vmatprep.subr.mxu0 0.0
      %499 = vmatpush2.msra.mxu0 0.0
      %500 = vmatprep.mubr.f32.mxu0 0.0
      %501 = vmatmul.mubr.f32.gmra.mxu0 %v363
      %v502 = vpop.f32.mrf.mxu0
      %v503 = vadd.f32 %v358, %v502
      %v504 = vpop.f32.mrf.mxu0
      %505 = vdwg.mxu0
      %v506 = vadd.f32 %v259, %v432
      %v507 = vxor.u32 %v506, 2147483648
      %v508 = vmul.f32 %v507, 1.442695
      %v509 = vpow.pop %v508
      %v510 = vadd.f32 %v509, 1.0
      %v511 = vrcp.pop %v510
      %v512 = vmul.f32 1.0, %v511
      %v513 = vadd.f32 %v261, %v434
      %v514 = vxor.u32 %v513, 2147483648
      %v515 = vmul.f32 %v514, 1.442695
      %v516 = vpow.pop %v515
      %v517 = vadd.f32 %v516, 1.0
      %v518 = vrcp.pop %v517
      %v519 = vmul.f32 1.0, %v518
      %v520 = vmul.f32 %v512, %v503
      %v521 = vadd.f32 %v330, %v520
      %v522 = vtanh.pop %v521
      %v523 = vsub.f32 1.0, %v519
      %v524 = vmul.f32 %v523, %v522
      %v525 = vmul.f32 %v519, %v158
      %v526 = vadd.f32 %v524, %v525
      %527 = vst.msk [vmem:[#allocation20] sm:$0xff] %vm188, %v526
      %v528 = vld [vmem:[#allocation8] sm:$0xff]
      %v529 = vld [vmem:[#allocation8 + $0x8] sm:$0xff]
      %v530 = vld [vmem:[#allocation8 + $0x10] sm:$0xff]
      %v531 = vld [vmem:[#allocation8 + $0x18] sm:$0xff]
      %v532 = vld [vmem:[#allocation8 + $0x20] sm:$0xff]
      %v533 = vld [vmem:[#allocation8 + $0x28] sm:$0xff]
      %v534 = vld [vmem:[#allocation8 + $0x30] sm:$0xff]
      %v535 = vld [vmem:[#allocation8 + $0x38] sm:$0xff]
      %v537 = vcombine.high %v526, %v526
      %v539 = vunpack.c.l.s4 1966171168
      %v540 = vunpack.c.0.s8 %v539
      %v541 = vlaneseq
      %v542 = vshrl.u32 %v541, 7
      %v543 = vsub.s32 %v540, %v542
      %v544 = vrot.slane %v526, %v543
      %v546 = vunpack.c.l.s4 1966171168
      %v547 = vunpack.c.0.s8 %v546
      %v548 = vlaneseq
      %v549 = vshrl.u32 %v548, 7
      %v550 = vsub.s32 %v547, %v549
      %v551 = vrot.slane %v537, %v550
      %v552 = vcombine.high %v544, %v544
      %v553 = vcombine.high %v551, %v551
      %v555 = vunpack.c.l.s4 1966171168
      %v556 = vunpack.c.0.s8 %v555
      %v557 = vlaneseq
      %v558 = vshrl.u32 %v557, 7
      %v559 = vsub.s32 %v556, %v558
      %v560 = vrot.slane %v544, %v559
      %v562 = vunpack.c.l.s4 1966171168
      %v563 = vunpack.c.0.s8 %v562
      %v564 = vlaneseq
      %v565 = vshrl.u32 %v564, 7
      %v566 = vsub.s32 %v563, %v565
      %v567 = vrot.slane %v551, %v566
      %v569 = vunpack.c.l.s4 1966171168
      %v570 = vunpack.c.0.s8 %v569
      %v571 = vlaneseq
      %v572 = vshrl.u32 %v571, 7
      %v573 = vsub.s32 %v570, %v572
      %v574 = vrot.slane %v552, %v573
      %v576 = vunpack.c.l.s4 1966171168
      %v577 = vunpack.c.0.s8 %v576
      %v578 = vlaneseq
      %v579 = vshrl.u32 %v578, 7
      %v580 = vsub.s32 %v577, %v579
      %v581 = vrot.slane %v553, %v580
      %v582 = vcombine.high %v560, %v560
      %v583 = vcombine.high %v567, %v567
      %v584 = vcombine.high %v574, %v574
      %v585 = vcombine.high %v581, %v581
      %v586 = vsel %vm188, %v560, 0
      %v589 = vsel %vm188, %v528, 0
      %591 = vmatprep.subr.mxu0 0.0
      %592 = vmatpush1.xpose.msra.mxu0 0.0
      %593 = vmatprep.subr.mxu0 0.0
      %594 = vmatpush1.xpose.msra.mxu0 0.0
      %595 = vmatprep.subr.mxu0 0.0
      %596 = vmatpush1.xpose.msra.mxu0 0.0
      %597 = vmatprep.subr.mxu0 0.0
      %598 = vmatpush1.xpose.msra.mxu0 0.0
      %599 = vmatprep.subr.mxu0 0.0
      %600 = vmatpush1.xpose.msra.mxu0 0.0
      %601 = vmatprep.subr.mxu0 0.0
      %602 = vmatpush1.xpose.msra.mxu0 0.0
      %603 = vmatprep.subr.mxu0 0.0
      %604 = vmatpush1.xpose.msra.mxu0 0.0
      %605 = vmatprep.subr.mxu0 0.0
      %606 = vmatpush1.xpose.msra.mxu0 0.0
      %607 = vmatprep.subr.mxu0 0.0
      %608 = vmatpush1.xpose.msra.mxu0 0.0
      %609 = vmatprep.subr.mxu0 0.0
      %610 = vmatpush1.xpose.msra.mxu0 0.0
      %611 = vmatprep.subr.mxu0 0.0
      %612 = vmatpush1.xpose.msra.mxu0 0.0
      %613 = vmatprep.subr.mxu0 0.0
      %614 = vmatpush1.xpose.msra.mxu0 0.0
      %615 = vmatprep.subr.mxu0 0.0
      %616 = vmatpush1.xpose.msra.mxu0 0.0
      %617 = vmatprep.subr.mxu0 0.0
      %618 = vmatpush1.xpose.msra.mxu0 0.0
      %619 = vmatprep.subr.mxu0 0.0
      %620 = vmatpush1.xpose.msra.mxu0 0.0
      %621 = vmatprep.subr.mxu0 0.0
      %622 = vmatpush1.xpose.msra.mxu0 %v589
      %623 = vmatprep.subr.mxu0 0.0
      %624 = vmatpush2.xpose.msra.mxu0 0.0
      %625 = vmatprep.subr.mxu0 0.0
      %626 = vmatpush2.xpose.msra.mxu0 0.0
      %627 = vmatprep.subr.mxu0 0.0
      %628 = vmatpush2.xpose.msra.mxu0 0.0
      %629 = vmatprep.subr.mxu0 0.0
      %630 = vmatpush2.xpose.msra.mxu0 0.0
      %631 = vmatprep.subr.mxu0 0.0
      %632 = vmatpush2.xpose.msra.mxu0 0.0
      %633 = vmatprep.subr.mxu0 0.0
      %634 = vmatpush2.xpose.msra.mxu0 0.0
      %635 = vmatprep.subr.mxu0 0.0
      %636 = vmatpush2.xpose.msra.mxu0 0.0
      %637 = vmatprep.subr.mxu0 0.0
      %638 = vmatpush2.xpose.msra.mxu0 0.0
      %639 = vmatprep.subr.mxu0 0.0
      %640 = vmatpush2.xpose.msra.mxu0 0.0
      %641 = vmatprep.subr.mxu0 0.0
      %642 = vmatpush2.xpose.msra.mxu0 0.0
      %643 = vmatprep.subr.mxu0 0.0
      %644 = vmatpush2.xpose.msra.mxu0 0.0
      %645 = vmatprep.subr.mxu0 0.0
      %646 = vmatpush2.xpose.msra.mxu0 0.0
      %647 = vmatprep.subr.mxu0 0.0
      %648 = vmatpush2.xpose.msra.mxu0 0.0
      %649 = vmatprep.subr.mxu0 0.0
      %650 = vmatpush2.xpose.msra.mxu0 0.0
      %651 = vmatprep.subr.mxu0 0.0
      %652 = vmatpush2.xpose.msra.mxu0 0.0
      %653 = vmatprep.subr.mxu0 0.0
      %654 = vmatpush2.xpose.msra.mxu0 0.0
      %655 = vmatprep.mubr.f32.mxu0 0.0
      %656 = vmatmul.mubr.f32.gmra.mxu0 %v586
      %v657 = vpop.f32.mrf.mxu0
      %v658 = vadd.f32 0.0, %v657
      %v659 = vpop.f32.mrf.mxu0
      %660 = vdwg.mxu0
      %v661 = vsel %vm188, %v574, 0
      %v664 = vsel %vm188, %v529, 0
      %666 = vmatprep.subr.mxu0 0.0
      %667 = vmatpush1.xpose.msra.mxu0 0.0
      %668 = vmatprep.subr.mxu0 0.0
      %669 = vmatpush1.xpose.msra.mxu0 0.0
      %670 = vmatprep.subr.mxu0 0.0
      %671 = vmatpush1.xpose.msra.mxu0 0.0
      %672 = vmatprep.subr.mxu0 0.0
      %673 = vmatpush1.xpose.msra.mxu0 0.0
      %674 = vmatprep.subr.mxu0 0.0
      %675 = vmatpush1.xpose.msra.mxu0 0.0
      %676 = vmatprep.subr.mxu0 0.0
      %677 = vmatpush1.xpose.msra.mxu0 0.0
      %678 = vmatprep.subr.mxu0 0.0
      %679 = vmatpush1.xpose.msra.mxu0 0.0
      %680 = vmatprep.subr.mxu0 0.0
      %681 = vmatpush1.xpose.msra.mxu0 0.0
      %682 = vmatprep.subr.mxu0 0.0
      %683 = vmatpush1.xpose.msra.mxu0 0.0
      %684 = vmatprep.subr.mxu0 0.0
      %685 = vmatpush1.xpose.msra.mxu0 0.0
      %686 = vmatprep.subr.mxu0 0.0
      %687 = vmatpush1.xpose.msra.mxu0 0.0
      %688 = vmatprep.subr.mxu0 0.0
      %689 = vmatpush1.xpose.msra.mxu0 0.0
      %690 = vmatprep.subr.mxu0 0.0
      %691 = vmatpush1.xpose.msra.mxu0 0.0
      %692 = vmatprep.subr.mxu0 0.0
      %693 = vmatpush1.xpose.msra.mxu0 0.0
      %694 = vmatprep.subr.mxu0 0.0
      %695 = vmatpush1.xpose.msra.mxu0 0.0
      %696 = vmatprep.subr.mxu0 0.0
      %697 = vmatpush1.xpose.msra.mxu0 %v664
      %698 = vmatprep.subr.mxu0 0.0
      %699 = vmatpush2.xpose.msra.mxu0 0.0
      %700 = vmatprep.subr.mxu0 0.0
      %701 = vmatpush2.xpose.msra.mxu0 0.0
      %702 = vmatprep.subr.mxu0 0.0
      %703 = vmatpush2.xpose.msra.mxu0 0.0
      %704 = vmatprep.subr.mxu0 0.0
      %705 = vmatpush2.xpose.msra.mxu0 0.0
      %706 = vmatprep.subr.mxu0 0.0
      %707 = vmatpush2.xpose.msra.mxu0 0.0
      %708 = vmatprep.subr.mxu0 0.0
      %709 = vmatpush2.xpose.msra.mxu0 0.0
      %710 = vmatprep.subr.mxu0 0.0
      %711 = vmatpush2.xpose.msra.mxu0 0.0
      %712 = vmatprep.subr.mxu0 0.0
      %713 = vmatpush2.xpose.msra.mxu0 0.0
      %714 = vmatprep.subr.mxu0 0.0
      %715 = vmatpush2.xpose.msra.mxu0 0.0
      %716 = vmatprep.subr.mxu0 0.0
      %717 = vmatpush2.xpose.msra.mxu0 0.0
      %718 = vmatprep.subr.mxu0 0.0
      %719 = vmatpush2.xpose.msra.mxu0 0.0
      %720 = vmatprep.subr.mxu0 0.0
      %721 = vmatpush2.xpose.msra.mxu0 0.0
      %722 = vmatprep.subr.mxu0 0.0
      %723 = vmatpush2.xpose.msra.mxu0 0.0
      %724 = vmatprep.subr.mxu0 0.0
      %725 = vmatpush2.xpose.msra.mxu0 0.0
      %726 = vmatprep.subr.mxu0 0.0
      %727 = vmatpush2.xpose.msra.mxu0 0.0
      %728 = vmatprep.subr.mxu0 0.0
      %729 = vmatpush2.xpose.msra.mxu0 0.0
      %730 = vmatprep.mubr.f32.mxu0 0.0
      %731 = vmatmul.mubr.f32.gmra.mxu0 %v661
      %v732 = vpop.f32.mrf.mxu0
      %v733 = vadd.f32 0.0, %v732
      %v734 = vpop.f32.mrf.mxu0
      %735 = vdwg.mxu0
      %v736 = vsel %vm188, %v582, 0
      %v739 = vsel %vm188, %v530, 0
      %741 = vmatprep.subr.mxu0 0.0
      %742 = vmatpush1.xpose.msra.mxu0 0.0
      %743 = vmatprep.subr.mxu0 0.0
      %744 = vmatpush1.xpose.msra.mxu0 0.0
      %745 = vmatprep.subr.mxu0 0.0
      %746 = vmatpush1.xpose.msra.mxu0 0.0
      %747 = vmatprep.subr.mxu0 0.0
      %748 = vmatpush1.xpose.msra.mxu0 0.0
      %749 = vmatprep.subr.mxu0 0.0
      %750 = vmatpush1.xpose.msra.mxu0 0.0
      %751 = vmatprep.subr.mxu0 0.0
      %752 = vmatpush1.xpose.msra.mxu0 0.0
      %753 = vmatprep.subr.mxu0 0.0
      %754 = vmatpush1.xpose.msra.mxu0 0.0
      %755 = vmatprep.subr.mxu0 0.0
      %756 = vmatpush1.xpose.msra.mxu0 0.0
      %757 = vmatprep.subr.mxu0 0.0
      %758 = vmatpush1.xpose.msra.mxu0 0.0
      %759 = vmatprep.subr.mxu0 0.0
      %760 = vmatpush1.xpose.msra.mxu0 0.0
      %761 = vmatprep.subr.mxu0 0.0
      %762 = vmatpush1.xpose.msra.mxu0 0.0
      %763 = vmatprep.subr.mxu0 0.0
      %764 = vmatpush1.xpose.msra.mxu0 0.0
      %765 = vmatprep.subr.mxu0 0.0
      %766 = vmatpush1.xpose.msra.mxu0 0.0
      %767 = vmatprep.subr.mxu0 0.0
      %768 = vmatpush1.xpose.msra.mxu0 0.0
      %769 = vmatprep.subr.mxu0 0.0
      %770 = vmatpush1.xpose.msra.mxu0 0.0
      %771 = vmatprep.subr.mxu0 0.0
      %772 = vmatpush1.xpose.msra.mxu0 %v739
      %773 = vmatprep.subr.mxu0 0.0
      %774 = vmatpush2.xpose.msra.mxu0 0.0
      %775 = vmatprep.subr.mxu0 0.0
      %776 = vmatpush2.xpose.msra.mxu0 0.0
      %777 = vmatprep.subr.mxu0 0.0
      %778 = vmatpush2.xpose.msra.mxu0 0.0
      %779 = vmatprep.subr.mxu0 0.0
      %780 = vmatpush2.xpose.msra.mxu0 0.0
      %781 = vmatprep.subr.mxu0 0.0
      %782 = vmatpush2.xpose.msra.mxu0 0.0
      %783 = vmatprep.subr.mxu0 0.0
      %784 = vmatpush2.xpose.msra.mxu0 0.0
      %785 = vmatprep.subr.mxu0 0.0
      %786 = vmatpush2.xpose.msra.mxu0 0.0
      %787 = vmatprep.subr.mxu0 0.0
      %788 = vmatpush2.xpose.msra.mxu0 0.0
      %789 = vmatprep.subr.mxu0 0.0
      %790 = vmatpush2.xpose.msra.mxu0 0.0
      %791 = vmatprep.subr.mxu0 0.0
      %792 = vmatpush2.xpose.msra.mxu0 0.0
      %793 = vmatprep.subr.mxu0 0.0
      %794 = vmatpush2.xpose.msra.mxu0 0.0
      %795 = vmatprep.subr.mxu0 0.0
      %796 = vmatpush2.xpose.msra.mxu0 0.0
      %797 = vmatprep.subr.mxu0 0.0
      %798 = vmatpush2.xpose.msra.mxu0 0.0
      %799 = vmatprep.subr.mxu0 0.0
      %800 = vmatpush2.xpose.msra.mxu0 0.0
      %801 = vmatprep.subr.mxu0 0.0
      %802 = vmatpush2.xpose.msra.mxu0 0.0
      %803 = vmatprep.subr.mxu0 0.0
      %804 = vmatpush2.xpose.msra.mxu0 0.0
      %805 = vmatprep.mubr.f32.mxu0 0.0
      %806 = vmatmul.mubr.f32.gmra.mxu0 %v736
      %v807 = vpop.f32.mrf.mxu0
      %v808 = vadd.f32 0.0, %v807
      %v809 = vpop.f32.mrf.mxu0
      %810 = vdwg.mxu0
      %v811 = vsel %vm188, %v584, 0
      %v814 = vsel %vm188, %v531, 0
      %816 = vmatprep.subr.mxu0 0.0
      %817 = vmatpush1.xpose.msra.mxu0 0.0
      %818 = vmatprep.subr.mxu0 0.0
      %819 = vmatpush1.xpose.msra.mxu0 0.0
      %820 = vmatprep.subr.mxu0 0.0
      %821 = vmatpush1.xpose.msra.mxu0 0.0
      %822 = vmatprep.subr.mxu0 0.0
      %823 = vmatpush1.xpose.msra.mxu0 0.0
      %824 = vmatprep.subr.mxu0 0.0
      %825 = vmatpush1.xpose.msra.mxu0 0.0
      %826 = vmatprep.subr.mxu0 0.0
      %827 = vmatpush1.xpose.msra.mxu0 0.0
      %828 = vmatprep.subr.mxu0 0.0
      %829 = vmatpush1.xpose.msra.mxu0 0.0
      %830 = vmatprep.subr.mxu0 0.0
      %831 = vmatpush1.xpose.msra.mxu0 0.0
      %832 = vmatprep.subr.mxu0 0.0
      %833 = vmatpush1.xpose.msra.mxu0 0.0
      %834 = vmatprep.subr.mxu0 0.0
      %835 = vmatpush1.xpose.msra.mxu0 0.0
      %836 = vmatprep.subr.mxu0 0.0
      %837 = vmatpush1.xpose.msra.mxu0 0.0
      %838 = vmatprep.subr.mxu0 0.0
      %839 = vmatpush1.xpose.msra.mxu0 0.0
      %840 = vmatprep.subr.mxu0 0.0
      %841 = vmatpush1.xpose.msra.mxu0 0.0
      %842 = vmatprep.subr.mxu0 0.0
      %843 = vmatpush1.xpose.msra.mxu0 0.0
      %844 = vmatprep.subr.mxu0 0.0
      %845 = vmatpush1.xpose.msra.mxu0 0.0
      %846 = vmatprep.subr.mxu0 0.0
      %847 = vmatpush1.xpose.msra.mxu0 %v814
      %848 = vmatprep.subr.mxu0 0.0
      %849 = vmatpush2.xpose.msra.mxu0 0.0
      %850 = vmatprep.subr.mxu0 0.0
      %851 = vmatpush2.xpose.msra.mxu0 0.0
      %852 = vmatprep.subr.mxu0 0.0
      %853 = vmatpush2.xpose.msra.mxu0 0.0
      %854 = vmatprep.subr.mxu0 0.0
      %855 = vmatpush2.xpose.msra.mxu0 0.0
      %856 = vmatprep.subr.mxu0 0.0
      %857 = vmatpush2.xpose.msra.mxu0 0.0
      %858 = vmatprep.subr.mxu0 0.0
      %859 = vmatpush2.xpose.msra.mxu0 0.0
      %860 = vmatprep.subr.mxu0 0.0
      %861 = vmatpush2.xpose.msra.mxu0 0.0
      %862 = vmatprep.subr.mxu0 0.0
      %863 = vmatpush2.xpose.msra.mxu0 0.0
      %864 = vmatprep.subr.mxu0 0.0
      %865 = vmatpush2.xpose.msra.mxu0 0.0
      %866 = vmatprep.subr.mxu0 0.0
      %867 = vmatpush2.xpose.msra.mxu0 0.0
      %868 = vmatprep.subr.mxu0 0.0
      %869 = vmatpush2.xpose.msra.mxu0 0.0
      %870 = vmatprep.subr.mxu0 0.0
      %871 = vmatpush2.xpose.msra.mxu0 0.0
      %872 = vmatprep.subr.mxu0 0.0
      %873 = vmatpush2.xpose.msra.mxu0 0.0
      %874 = vmatprep.subr.mxu0 0.0
      %875 = vmatpush2.xpose.msra.mxu0 0.0
      %876 = vmatprep.subr.mxu0 0.0
      %877 = vmatpush2.xpose.msra.mxu0 0.0
      %878 = vmatprep.subr.mxu0 0.0
      %879 = vmatpush2.xpose.msra.mxu0 0.0
      %880 = vmatprep.mubr.f32.mxu0 0.0
      %881 = vmatmul.mubr.f32.gmra.mxu0 %v811
      %v882 = vpop.f32.mrf.mxu0
      %v883 = vadd.f32 0.0, %v882
      %v884 = vpop.f32.mrf.mxu0
      %885 = vdwg.mxu0
      %v886 = vsel %vm188, %v567, 0
      %v889 = vsel %vm188, %v532, 0
      %891 = vmatprep.subr.mxu0 0.0
      %892 = vmatpush1.xpose.msra.mxu0 0.0
      %893 = vmatprep.subr.mxu0 0.0
      %894 = vmatpush1.xpose.msra.mxu0 0.0
      %895 = vmatprep.subr.mxu0 0.0
      %896 = vmatpush1.xpose.msra.mxu0 0.0
      %897 = vmatprep.subr.mxu0 0.0
      %898 = vmatpush1.xpose.msra.mxu0 0.0
      %899 = vmatprep.subr.mxu0 0.0
      %900 = vmatpush1.xpose.msra.mxu0 0.0
      %901 = vmatprep.subr.mxu0 0.0
      %902 = vmatpush1.xpose.msra.mxu0 0.0
      %903 = vmatprep.subr.mxu0 0.0
      %904 = vmatpush1.xpose.msra.mxu0 0.0
      %905 = vmatprep.subr.mxu0 0.0
      %906 = vmatpush1.xpose.msra.mxu0 0.0
      %907 = vmatprep.subr.mxu0 0.0
      %908 = vmatpush1.xpose.msra.mxu0 0.0
      %909 = vmatprep.subr.mxu0 0.0
      %910 = vmatpush1.xpose.msra.mxu0 0.0
      %911 = vmatprep.subr.mxu0 0.0
      %912 = vmatpush1.xpose.msra.mxu0 0.0
      %913 = vmatprep.subr.mxu0 0.0
      %914 = vmatpush1.xpose.msra.mxu0 0.0
      %915 = vmatprep.subr.mxu0 0.0
      %916 = vmatpush1.xpose.msra.mxu0 0.0
      %917 = vmatprep.subr.mxu0 0.0
      %918 = vmatpush1.xpose.msra.mxu0 0.0
      %919 = vmatprep.subr.mxu0 0.0
      %920 = vmatpush1.xpose.msra.mxu0 0.0
      %921 = vmatprep.subr.mxu0 0.0
      %922 = vmatpush1.xpose.msra.mxu0 %v889
      %923 = vmatprep.subr.mxu0 0.0
      %924 = vmatpush2.xpose.msra.mxu0 0.0
      %925 = vmatprep.subr.mxu0 0.0
      %926 = vmatpush2.xpose.msra.mxu0 0.0
      %927 = vmatprep.subr.mxu0 0.0
      %928 = vmatpush2.xpose.msra.mxu0 0.0
      %929 = vmatprep.subr.mxu0 0.0
      %930 = vmatpush2.xpose.msra.mxu0 0.0
      %931 = vmatprep.subr.mxu0 0.0
      %932 = vmatpush2.xpose.msra.mxu0 0.0
      %933 = vmatprep.subr.mxu0 0.0
      %934 = vmatpush2.xpose.msra.mxu0 0.0
      %935 = vmatprep.subr.mxu0 0.0
      %936 = vmatpush2.xpose.msra.mxu0 0.0
      %937 = vmatprep.subr.mxu0 0.0
      %938 = vmatpush2.xpose.msra.mxu0 0.0
      %939 = vmatprep.subr.mxu0 0.0
      %940 = vmatpush2.xpose.msra.mxu0 0.0
      %941 = vmatprep.subr.mxu0 0.0
      %942 = vmatpush2.xpose.msra.mxu0 0.0
      %943 = vmatprep.subr.mxu0 0.0
      %944 = vmatpush2.xpose.msra.mxu0 0.0
      %945 = vmatprep.subr.mxu0 0.0
      %946 = vmatpush2.xpose.msra.mxu0 0.0
      %947 = vmatprep.subr.mxu0 0.0
      %948 = vmatpush2.xpose.msra.mxu0 0.0
      %949 = vmatprep.subr.mxu0 0.0
      %950 = vmatpush2.xpose.msra.mxu0 0.0
      %951 = vmatprep.subr.mxu0 0.0
      %952 = vmatpush2.xpose.msra.mxu0 0.0
      %953 = vmatprep.subr.mxu0 0.0
      %954 = vmatpush2.xpose.msra.mxu0 0.0
      %955 = vmatprep.mubr.f32.mxu0 0.0
      %956 = vmatmul.mubr.f32.gmra.mxu0 %v886
      %v957 = vpop.f32.mrf.mxu0
      %v958 = vadd.f32 0.0, %v957
      %v959 = vpop.f32.mrf.mxu0
      %960 = vdwg.mxu0
      %v961 = vsel %vm188, %v581, 0
      %v964 = vsel %vm188, %v533, 0
      %966 = vmatprep.subr.mxu0 0.0
      %967 = vmatpush1.xpose.msra.mxu0 0.0
      %968 = vmatprep.subr.mxu0 0.0
      %969 = vmatpush1.xpose.msra.mxu0 0.0
      %970 = vmatprep.subr.mxu0 0.0
      %971 = vmatpush1.xpose.msra.mxu0 0.0
      %972 = vmatprep.subr.mxu0 0.0
      %973 = vmatpush1.xpose.msra.mxu0 0.0
      %974 = vmatprep.subr.mxu0 0.0
      %975 = vmatpush1.xpose.msra.mxu0 0.0
      %976 = vmatprep.subr.mxu0 0.0
      %977 = vmatpush1.xpose.msra.mxu0 0.0
      %978 = vmatprep.subr.mxu0 0.0
      %979 = vmatpush1.xpose.msra.mxu0 0.0
      %980 = vmatprep.subr.mxu0 0.0
      %981 = vmatpush1.xpose.msra.mxu0 0.0
      %982 = vmatprep.subr.mxu0 0.0
      %983 = vmatpush1.xpose.msra.mxu0 0.0
      %984 = vmatprep.subr.mxu0 0.0
      %985 = vmatpush1.xpose.msra.mxu0 0.0
      %986 = vmatprep.subr.mxu0 0.0
      %987 = vmatpush1.xpose.msra.mxu0 0.0
      %988 = vmatprep.subr.mxu0 0.0
      %989 = vmatpush1.xpose.msra.mxu0 0.0
      %990 = vmatprep.subr.mxu0 0.0
      %991 = vmatpush1.xpose.msra.mxu0 0.0
      %992 = vmatprep.subr.mxu0 0.0
      %993 = vmatpush1.xpose.msra.mxu0 0.0
      %994 = vmatprep.subr.mxu0 0.0
      %995 = vmatpush1.xpose.msra.mxu0 0.0
      %996 = vmatprep.subr.mxu0 0.0
      %997 = vmatpush1.xpose.msra.mxu0 %v964
      %998 = vmatprep.subr.mxu0 0.0
      %999 = vmatpush2.xpose.msra.mxu0 0.0
      %1000 = vmatprep.subr.mxu0 0.0
      %1001 = vmatpush2.xpose.msra.mxu0 0.0
      %1002 = vmatprep.subr.mxu0 0.0
      %1003 = vmatpush2.xpose.msra.mxu0 0.0
      %1004 = vmatprep.subr.mxu0 0.0
      %1005 = vmatpush2.xpose.msra.mxu0 0.0
      %1006 = vmatprep.subr.mxu0 0.0
      %1007 = vmatpush2.xpose.msra.mxu0 0.0
      %1008 = vmatprep.subr.mxu0 0.0
      %1009 = vmatpush2.xpose.msra.mxu0 0.0
      %1010 = vmatprep.subr.mxu0 0.0
      %1011 = vmatpush2.xpose.msra.mxu0 0.0
      %1012 = vmatprep.subr.mxu0 0.0
      %1013 = vmatpush2.xpose.msra.mxu0 0.0
      %1014 = vmatprep.subr.mxu0 0.0
      %1015 = vmatpush2.xpose.msra.mxu0 0.0
      %1016 = vmatprep.subr.mxu0 0.0
      %1017 = vmatpush2.xpose.msra.mxu0 0.0
      %1018 = vmatprep.subr.mxu0 0.0
      %1019 = vmatpush2.xpose.msra.mxu0 0.0
      %1020 = vmatprep.subr.mxu0 0.0
      %1021 = vmatpush2.xpose.msra.mxu0 0.0
      %1022 = vmatprep.subr.mxu0 0.0
      %1023 = vmatpush2.xpose.msra.mxu0 0.0
      %1024 = vmatprep.subr.mxu0 0.0
      %1025 = vmatpush2.xpose.msra.mxu0 0.0
      %1026 = vmatprep.subr.mxu0 0.0
      %1027 = vmatpush2.xpose.msra.mxu0 0.0
      %1028 = vmatprep.subr.mxu0 0.0
      %1029 = vmatpush2.xpose.msra.mxu0 0.0
      %1030 = vmatprep.mubr.f32.mxu0 0.0
      %1031 = vmatmul.mubr.f32.gmra.mxu0 %v961
      %v1032 = vpop.f32.mrf.mxu0
      %v1033 = vadd.f32 0.0, %v1032
      %v1034 = vpop.f32.mrf.mxu0
      %1035 = vdwg.mxu0
      %v1036 = vsel %vm188, %v583, 0
      %v1039 = vsel %vm188, %v534, 0
      %1041 = vmatprep.subr.mxu0 0.0
      %1042 = vmatpush1.xpose.msra.mxu0 0.0
      %1043 = vmatprep.subr.mxu0 0.0
      %1044 = vmatpush1.xpose.msra.mxu0 0.0
      %1045 = vmatprep.subr.mxu0 0.0
      %1046 = vmatpush1.xpose.msra.mxu0 0.0
      %1047 = vmatprep.subr.mxu0 0.0
      %1048 = vmatpush1.xpose.msra.mxu0 0.0
      %1049 = vmatprep.subr.mxu0 0.0
      %1050 = vmatpush1.xpose.msra.mxu0 0.0
      %1051 = vmatprep.subr.mxu0 0.0
      %1052 = vmatpush1.xpose.msra.mxu0 0.0
      %1053 = vmatprep.subr.mxu0 0.0
      %1054 = vmatpush1.xpose.msra.mxu0 0.0
      %1055 = vmatprep.subr.mxu0 0.0
      %1056 = vmatpush1.xpose.msra.mxu0 0.0
      %1057 = vmatprep.subr.mxu0 0.0
      %1058 = vmatpush1.xpose.msra.mxu0 0.0
      %1059 = vmatprep.subr.mxu0 0.0
      %1060 = vmatpush1.xpose.msra.mxu0 0.0
      %1061 = vmatprep.subr.mxu0 0.0
      %1062 = vmatpush1.xpose.msra.mxu0 0.0
      %1063 = vmatprep.subr.mxu0 0.0
      %1064 = vmatpush1.xpose.msra.mxu0 0.0
      %1065 = vmatprep.subr.mxu0 0.0
      %1066 = vmatpush1.xpose.msra.mxu0 0.0
      %1067 = vmatprep.subr.mxu0 0.0
      %1068 = vmatpush1.xpose.msra.mxu0 0.0
      %1069 = vmatprep.subr.mxu0 0.0
      %1070 = vmatpush1.xpose.msra.mxu0 0.0
      %1071 = vmatprep.subr.mxu0 0.0
      %1072 = vmatpush1.xpose.msra.mxu0 %v1039
      %1073 = vmatprep.subr.mxu0 0.0
      %1074 = vmatpush2.xpose.msra.mxu0 0.0
      %1075 = vmatprep.subr.mxu0 0.0
      %1076 = vmatpush2.xpose.msra.mxu0 0.0
      %1077 = vmatprep.subr.mxu0 0.0
      %1078 = vmatpush2.xpose.msra.mxu0 0.0
      %1079 = vmatprep.subr.mxu0 0.0
      %1080 = vmatpush2.xpose.msra.mxu0 0.0
      %1081 = vmatprep.subr.mxu0 0.0
      %1082 = vmatpush2.xpose.msra.mxu0 0.0
      %1083 = vmatprep.subr.mxu0 0.0
      %1084 = vmatpush2.xpose.msra.mxu0 0.0
      %1085 = vmatprep.subr.mxu0 0.0
      %1086 = vmatpush2.xpose.msra.mxu0 0.0
      %1087 = vmatprep.subr.mxu0 0.0
      %1088 = vmatpush2.xpose.msra.mxu0 0.0
      %1089 = vmatprep.subr.mxu0 0.0
      %1090 = vmatpush2.xpose.msra.mxu0 0.0
      %1091 = vmatprep.subr.mxu0 0.0
      %1092 = vmatpush2.xpose.msra.mxu0 0.0
      %1093 = vmatprep.subr.mxu0 0.0
      %1094 = vmatpush2.xpose.msra.mxu0 0.0
      %1095 = vmatprep.subr.mxu0 0.0
      %1096 = vmatpush2.xpose.msra.mxu0 0.0
      %1097 = vmatprep.subr.mxu0 0.0
      %1098 = vmatpush2.xpose.msra.mxu0 0.0
      %1099 = vmatprep.subr.mxu0 0.0
      %1100 = vmatpush2.xpose.msra.mxu0 0.0
      %1101 = vmatprep.subr.mxu0 0.0
      %1102 = vmatpush2.xpose.msra.mxu0 0.0
      %1103 = vmatprep.subr.mxu0 0.0
      %1104 = vmatpush2.xpose.msra.mxu0 0.0
      %1105 = vmatprep.mubr.f32.mxu0 0.0
      %1106 = vmatmul.mubr.f32.gmra.mxu0 %v1036
      %v1107 = vpop.f32.mrf.mxu0
      %v1108 = vadd.f32 0.0, %v1107
      %v1109 = vpop.f32.mrf.mxu0
      %1110 = vdwg.mxu0
      %v1111 = vsel %vm188, %v585, 0
      %v1114 = vsel %vm188, %v535, 0
      %1116 = vmatprep.subr.mxu0 0.0
      %1117 = vmatpush1.xpose.msra.mxu0 0.0
      %1118 = vmatprep.subr.mxu0 0.0
      %1119 = vmatpush1.xpose.msra.mxu0 0.0
      %1120 = vmatprep.subr.mxu0 0.0
      %1121 = vmatpush1.xpose.msra.mxu0 0.0
      %1122 = vmatprep.subr.mxu0 0.0
      %1123 = vmatpush1.xpose.msra.mxu0 0.0
      %1124 = vmatprep.subr.mxu0 0.0
      %1125 = vmatpush1.xpose.msra.mxu0 0.0
      %1126 = vmatprep.subr.mxu0 0.0
      %1127 = vmatpush1.xpose.msra.mxu0 0.0
      %1128 = vmatprep.subr.mxu0 0.0
      %1129 = vmatpush1.xpose.msra.mxu0 0.0
      %1130 = vmatprep.subr.mxu0 0.0
      %1131 = vmatpush1.xpose.msra.mxu0 0.0
      %1132 = vmatprep.subr.mxu0 0.0
      %1133 = vmatpush1.xpose.msra.mxu0 0.0
      %1134 = vmatprep.subr.mxu0 0.0
      %1135 = vmatpush1.xpose.msra.mxu0 0.0
      %1136 = vmatprep.subr.mxu0 0.0
      %1137 = vmatpush1.xpose.msra.mxu0 0.0
      %1138 = vmatprep.subr.mxu0 0.0
      %1139 = vmatpush1.xpose.msra.mxu0 0.0
      %1140 = vmatprep.subr.mxu0 0.0
      %1141 = vmatpush1.xpose.msra.mxu0 0.0
      %1142 = vmatprep.subr.mxu0 0.0
      %1143 = vmatpush1.xpose.msra.mxu0 0.0
      %1144 = vmatprep.subr.mxu0 0.0
      %1145 = vmatpush1.xpose.msra.mxu0 0.0
      %1146 = vmatprep.subr.mxu0 0.0
      %1147 = vmatpush1.xpose.msra.mxu0 %v1114
      %1148 = vmatprep.subr.mxu0 0.0
      %1149 = vmatpush2.xpose.msra.mxu0 0.0
      %1150 = vmatprep.subr.mxu0 0.0
      %1151 = vmatpush2.xpose.msra.mxu0 0.0
      %1152 = vmatprep.subr.mxu0 0.0
      %1153 = vmatpush2.xpose.msra.mxu0 0.0
      %1154 = vmatprep.subr.mxu0 0.0
      %1155 = vmatpush2.xpose.msra.mxu0 0.0
      %1156 = vmatprep.subr.mxu0 0.0
      %1157 = vmatpush2.xpose.msra.mxu0 0.0
      %1158 = vmatprep.subr.mxu0 0.0
      %1159 = vmatpush2.xpose.msra.mxu0 0.0
      %1160 = vmatprep.subr.mxu0 0.0
      %1161 = vmatpush2.xpose.msra.mxu0 0.0
      %1162 = vmatprep.subr.mxu0 0.0
      %1163 = vmatpush2.xpose.msra.mxu0 0.0
      %1164 = vmatprep.subr.mxu0 0.0
      %1165 = vmatpush2.xpose.msra.mxu0 0.0
      %1166 = vmatprep.subr.mxu0 0.0
      %1167 = vmatpush2.xpose.msra.mxu0 0.0
      %1168 = vmatprep.subr.mxu0 0.0
      %1169 = vmatpush2.xpose.msra.mxu0 0.0
      %1170 = vmatprep.subr.mxu0 0.0
      %1171 = vmatpush2.xpose.msra.mxu0 0.0
      %1172 = vmatprep.subr.mxu0 0.0
      %1173 = vmatpush2.xpose.msra.mxu0 0.0
      %1174 = vmatprep.subr.mxu0 0.0
      %1175 = vmatpush2.xpose.msra.mxu0 0.0
      %1176 = vmatprep.subr.mxu0 0.0
      %1177 = vmatpush2.xpose.msra.mxu0 0.0
      %1178 = vmatprep.subr.mxu0 0.0
      %1179 = vmatpush2.xpose.msra.mxu0 0.0
      %1180 = vmatprep.mubr.f32.mxu0 0.0
      %1181 = vmatmul.mubr.f32.gmra.mxu0 %v1111
      %v1182 = vpop.f32.mrf.mxu0
      %v1183 = vadd.f32 0.0, %v1182
      %v1184 = vpop.f32.mrf.mxu0
      %1185 = vdwg.mxu0
      %vm1186 = vcmask 57344
      %v1187 = vsel %vm1186, %v658, -inf
      %1188 = vmax.xlane.f32.xlu0 %v1187
      %v1189 = vpop.xlane.xlu0 %1188
      %v1190 = vsel %vm1186, %v733, -inf
      %1191 = vmax.xlane.f32.xlu0 %v1190
      %v1192 = vpop.xlane.xlu0 %1191
      %v1193 = vsel %vm1186, %v808, -inf
      %1194 = vmax.xlane.f32.xlu0 %v1193
      %v1195 = vpop.xlane.xlu0 %1194
      %v1196 = vsel %vm1186, %v883, -inf
      %1197 = vmax.xlane.f32.xlu0 %v1196
      %v1198 = vpop.xlane.xlu0 %1197
      %v1199 = vsel %vm1186, %v958, -inf
      %1200 = vmax.xlane.f32.xlu0 %v1199
      %v1201 = vpop.xlane.xlu0 %1200
      %v1202 = vsel %vm1186, %v1033, -inf
      %1203 = vmax.xlane.f32.xlu0 %v1202
      %v1204 = vpop.xlane.xlu0 %1203
      %v1205 = vsel %vm1186, %v1108, -inf
      %1206 = vmax.xlane.f32.xlu0 %v1205
      %v1207 = vpop.xlane.xlu0 %1206
      %v1208 = vsel %vm1186, %v1183, -inf
      %1209 = vmax.xlane.f32.xlu0 %v1208
      %v1210 = vpop.xlane.xlu0 %1209
      %v1211 = vsub.f32 %v658, %v1189
      %v1212 = vsub.f32 %v733, %v1192
      %v1213 = vsub.f32 %v808, %v1195
      %v1214 = vsub.f32 %v883, %v1198
      %v1215 = vsub.f32 %v958, %v1201
      %v1216 = vsub.f32 %v1033, %v1204
      %v1217 = vsub.f32 %v1108, %v1207
      %v1218 = vsub.f32 %v1183, %v1210
      %v1219 = vmul.f32 %v1211, 1.442695
      %v1220 = vpow.pop %v1219
      %v1221 = vmul.f32 %v1212, 1.442695
      %v1222 = vpow.pop %v1221
      %v1223 = vmul.f32 %v1213, 1.442695
      %v1224 = vpow.pop %v1223
      %v1225 = vmul.f32 %v1214, 1.442695
      %v1226 = vpow.pop %v1225
      %v1227 = vmul.f32 %v1215, 1.442695
      %v1228 = vpow.pop %v1227
      %v1229 = vmul.f32 %v1216, 1.442695
      %v1230 = vpow.pop %v1229
      %v1231 = vmul.f32 %v1217, 1.442695
      %v1232 = vpow.pop %v1231
      %v1233 = vmul.f32 %v1218, 1.442695
      %v1234 = vpow.pop %v1233
      %v1235 = vsel %vm1186, %v1220, 0.0
      %1236 = vadd.xlane.f32.xlu0 %v1235
      %v1237 = vpop.xlane.xlu0 %1236
      %v1238 = vsel %vm1186, %v1222, 0.0
      %1239 = vadd.xlane.f32.xlu0 %v1238
      %v1240 = vpop.xlane.xlu0 %1239
      %v1241 = vsel %vm1186, %v1224, 0.0
      %1242 = vadd.xlane.f32.xlu0 %v1241
      %v1243 = vpop.xlane.xlu0 %1242
      %v1244 = vsel %vm1186, %v1226, 0.0
      %1245 = vadd.xlane.f32.xlu0 %v1244
      %v1246 = vpop.xlane.xlu0 %1245
      %v1247 = vsel %vm1186, %v1228, 0.0
      %1248 = vadd.xlane.f32.xlu0 %v1247
      %v1249 = vpop.xlane.xlu0 %1248
      %v1250 = vsel %vm1186, %v1230, 0.0
      %1251 = vadd.xlane.f32.xlu0 %v1250
      %v1252 = vpop.xlane.xlu0 %1251
      %v1253 = vsel %vm1186, %v1232, 0.0
      %1254 = vadd.xlane.f32.xlu0 %v1253
      %v1255 = vpop.xlane.xlu0 %1254
      %v1256 = vsel %vm1186, %v1234, 0.0
      %1257 = vadd.xlane.f32.xlu0 %v1256
      %v1258 = vpop.xlane.xlu0 %1257
      %v1259 = vrcp.pop %v1237
      %v1260 = vrcp.pop %v1240
      %v1261 = vrcp.pop %v1243
      %v1262 = vrcp.pop %v1246
      %v1263 = vrcp.pop %v1249
      %v1264 = vrcp.pop %v1252
      %v1265 = vrcp.pop %v1255
      %v1266 = vrcp.pop %v1258
      %v1267 = vmul.f32 %v1220, %v1259
      %v1268 = vmul.f32 %v1222, %v1260
      %v1269 = vmul.f32 %v1224, %v1261
      %v1270 = vmul.f32 %v1226, %v1262
      %v1271 = vmul.f32 %v1228, %v1263
      %v1272 = vmul.f32 %v1230, %v1264
      %v1273 = vmul.f32 %v1232, %v1265
      %v1274 = vmul.f32 %v1234, %v1266
      %1275 = vst.msk [vmem:[#allocation21] sm:$0x1] %vm1186, %v1267
      %1276 = vst.msk [vmem:[#allocation21 + $0x1] sm:$0x1] %vm1186, %v1268
      %1277 = vst.msk [vmem:[#allocation21 + $0x2] sm:$0x1] %vm1186, %v1269
      %1278 = vst.msk [vmem:[#allocation21 + $0x3] sm:$0x1] %vm1186, %v1270
      %1279 = vst.msk [vmem:[#allocation21 + $0x4] sm:$0x1] %vm1186, %v1271
      %1280 = vst.msk [vmem:[#allocation21 + $0x5] sm:$0x1] %vm1186, %v1272
      %1281 = vst.msk [vmem:[#allocation21 + $0x6] sm:$0x1] %vm1186, %v1273
      %1282 = vst.msk [vmem:[#allocation21 + $0x7] sm:$0x1] %vm1186, %v1274
      %vm1283 = vcmask 64512
      %v1285 = vsel %vm1283, %v1267, 0
      %1287 = vmatprep.subr.mxu0 0.0
      %1288 = vmatpush1.msra.mxu0 0.0
      %1289 = vmatprep.subr.mxu0 0.0
      %1290 = vmatpush1.msra.mxu0 0.0
      %1291 = vmatprep.subr.mxu0 0.0
      %1292 = vmatpush1.msra.mxu0 0.0
      %1293 = vmatprep.subr.mxu0 0.0
      %1294 = vmatpush1.msra.mxu0 0.0
      %1295 = vmatprep.subr.mxu0 0.0
      %1296 = vmatpush1.msra.mxu0 0.0
      %1297 = vmatprep.subr.mxu0 0.0
      %1298 = vmatpush1.msra.mxu0 0.0
      %1299 = vmatprep.subr.mxu0 0.0
      %1300 = vmatpush1.msra.mxu0 0.0
      %1301 = vmatprep.subr.mxu0 0.0
      %1302 = vmatpush1.msra.mxu0 0.0
      %1303 = vmatprep.subr.mxu0 0.0
      %1304 = vmatpush1.msra.mxu0 0.0
      %1305 = vmatprep.subr.mxu0 0.0
      %1306 = vmatpush1.msra.mxu0 0.0
      %1307 = vmatprep.subr.mxu0 0.0
      %1308 = vmatpush1.msra.mxu0 0.0
      %1309 = vmatprep.subr.mxu0 0.0
      %1310 = vmatpush1.msra.mxu0 0.0
      %1311 = vmatprep.subr.mxu0 0.0
      %1312 = vmatpush1.msra.mxu0 0.0
      %1313 = vmatprep.subr.mxu0 0.0
      %1314 = vmatpush1.msra.mxu0 0.0
      %1315 = vmatprep.subr.mxu0 0.0
      %1316 = vmatpush1.msra.mxu0 0.0
      %1317 = vmatprep.subr.mxu0 0.0
      %1318 = vmatpush1.msra.mxu0 %v528
      %1319 = vmatprep.subr.mxu0 0.0
      %1320 = vmatpush2.msra.mxu0 0.0
      %1321 = vmatprep.subr.mxu0 0.0
      %1322 = vmatpush2.msra.mxu0 0.0
      %1323 = vmatprep.subr.mxu0 0.0
      %1324 = vmatpush2.msra.mxu0 0.0
      %1325 = vmatprep.subr.mxu0 0.0
      %1326 = vmatpush2.msra.mxu0 0.0
      %1327 = vmatprep.subr.mxu0 0.0
      %1328 = vmatpush2.msra.mxu0 0.0
      %1329 = vmatprep.subr.mxu0 0.0
      %1330 = vmatpush2.msra.mxu0 0.0
      %1331 = vmatprep.subr.mxu0 0.0
      %1332 = vmatpush2.msra.mxu0 0.0
      %1333 = vmatprep.subr.mxu0 0.0
      %1334 = vmatpush2.msra.mxu0 0.0
      %1335 = vmatprep.subr.mxu0 0.0
      %1336 = vmatpush2.msra.mxu0 0.0
      %1337 = vmatprep.subr.mxu0 0.0
      %1338 = vmatpush2.msra.mxu0 0.0
      %1339 = vmatprep.subr.mxu0 0.0
      %1340 = vmatpush2.msra.mxu0 0.0
      %1341 = vmatprep.subr.mxu0 0.0
      %1342 = vmatpush2.msra.mxu0 0.0
      %1343 = vmatprep.subr.mxu0 0.0
      %1344 = vmatpush2.msra.mxu0 0.0
      %1345 = vmatprep.subr.mxu0 0.0
      %1346 = vmatpush2.msra.mxu0 0.0
      %1347 = vmatprep.subr.mxu0 0.0
      %1348 = vmatpush2.msra.mxu0 0.0
      %1349 = vmatprep.subr.mxu0 0.0
      %1350 = vmatpush2.msra.mxu0 0.0
      %1351 = vmatprep.mubr.f32.mxu0 0.0
      %1352 = vmatmul.mubr.f32.gmra.mxu0 %v1285
      %v1353 = vpop.f32.mrf.mxu0
      %v1354 = vadd.f32 0.0, %v1353
      %v1355 = vpop.f32.mrf.mxu0
      %1356 = vdwg.mxu0
      %v1358 = vsel %vm1283, %v1268, 0
      %1360 = vmatprep.subr.mxu0 0.0
      %1361 = vmatpush1.msra.mxu0 0.0
      %1362 = vmatprep.subr.mxu0 0.0
      %1363 = vmatpush1.msra.mxu0 0.0
      %1364 = vmatprep.subr.mxu0 0.0
      %1365 = vmatpush1.msra.mxu0 0.0
      %1366 = vmatprep.subr.mxu0 0.0
      %1367 = vmatpush1.msra.mxu0 0.0
      %1368 = vmatprep.subr.mxu0 0.0
      %1369 = vmatpush1.msra.mxu0 0.0
      %1370 = vmatprep.subr.mxu0 0.0
      %1371 = vmatpush1.msra.mxu0 0.0
      %1372 = vmatprep.subr.mxu0 0.0
      %1373 = vmatpush1.msra.mxu0 0.0
      %1374 = vmatprep.subr.mxu0 0.0
      %1375 = vmatpush1.msra.mxu0 0.0
      %1376 = vmatprep.subr.mxu0 0.0
      %1377 = vmatpush1.msra.mxu0 0.0
      %1378 = vmatprep.subr.mxu0 0.0
      %1379 = vmatpush1.msra.mxu0 0.0
      %1380 = vmatprep.subr.mxu0 0.0
      %1381 = vmatpush1.msra.mxu0 0.0
      %1382 = vmatprep.subr.mxu0 0.0
      %1383 = vmatpush1.msra.mxu0 0.0
      %1384 = vmatprep.subr.mxu0 0.0
      %1385 = vmatpush1.msra.mxu0 0.0
      %1386 = vmatprep.subr.mxu0 0.0
      %1387 = vmatpush1.msra.mxu0 0.0
      %1388 = vmatprep.subr.mxu0 0.0
      %1389 = vmatpush1.msra.mxu0 0.0
      %1390 = vmatprep.subr.mxu0 0.0
      %1391 = vmatpush1.msra.mxu0 %v529
      %1392 = vmatprep.subr.mxu0 0.0
      %1393 = vmatpush2.msra.mxu0 0.0
      %1394 = vmatprep.subr.mxu0 0.0
      %1395 = vmatpush2.msra.mxu0 0.0
      %1396 = vmatprep.subr.mxu0 0.0
      %1397 = vmatpush2.msra.mxu0 0.0
      %1398 = vmatprep.subr.mxu0 0.0
      %1399 = vmatpush2.msra.mxu0 0.0
      %1400 = vmatprep.subr.mxu0 0.0
      %1401 = vmatpush2.msra.mxu0 0.0
      %1402 = vmatprep.subr.mxu0 0.0
      %1403 = vmatpush2.msra.mxu0 0.0
      %1404 = vmatprep.subr.mxu0 0.0
      %1405 = vmatpush2.msra.mxu0 0.0
      %1406 = vmatprep.subr.mxu0 0.0
      %1407 = vmatpush2.msra.mxu0 0.0
      %1408 = vmatprep.subr.mxu0 0.0
      %1409 = vmatpush2.msra.mxu0 0.0
      %1410 = vmatprep.subr.mxu0 0.0
      %1411 = vmatpush2.msra.mxu0 0.0
      %1412 = vmatprep.subr.mxu0 0.0
      %1413 = vmatpush2.msra.mxu0 0.0
      %1414 = vmatprep.subr.mxu0 0.0
      %1415 = vmatpush2.msra.mxu0 0.0
      %1416 = vmatprep.subr.mxu0 0.0
      %1417 = vmatpush2.msra.mxu0 0.0
      %1418 = vmatprep.subr.mxu0 0.0
      %1419 = vmatpush2.msra.mxu0 0.0
      %1420 = vmatprep.subr.mxu0 0.0
      %1421 = vmatpush2.msra.mxu0 0.0
      %1422 = vmatprep.subr.mxu0 0.0
      %1423 = vmatpush2.msra.mxu0 0.0
      %1424 = vmatprep.mubr.f32.mxu0 0.0
      %1425 = vmatmul.mubr.f32.gmra.mxu0 %v1358
      %v1426 = vpop.f32.mrf.mxu0
      %v1427 = vadd.f32 0.0, %v1426
      %v1428 = vpop.f32.mrf.mxu0
      %1429 = vdwg.mxu0
      %v1431 = vsel %vm1283, %v1269, 0
      %1433 = vmatprep.subr.mxu0 0.0
      %1434 = vmatpush1.msra.mxu0 0.0
      %1435 = vmatprep.subr.mxu0 0.0
      %1436 = vmatpush1.msra.mxu0 0.0
      %1437 = vmatprep.subr.mxu0 0.0
      %1438 = vmatpush1.msra.mxu0 0.0
      %1439 = vmatprep.subr.mxu0 0.0
      %1440 = vmatpush1.msra.mxu0 0.0
      %1441 = vmatprep.subr.mxu0 0.0
      %1442 = vmatpush1.msra.mxu0 0.0
      %1443 = vmatprep.subr.mxu0 0.0
      %1444 = vmatpush1.msra.mxu0 0.0
      %1445 = vmatprep.subr.mxu0 0.0
      %1446 = vmatpush1.msra.mxu0 0.0
      %1447 = vmatprep.subr.mxu0 0.0
      %1448 = vmatpush1.msra.mxu0 0.0
      %1449 = vmatprep.subr.mxu0 0.0
      %1450 = vmatpush1.msra.mxu0 0.0
      %1451 = vmatprep.subr.mxu0 0.0
      %1452 = vmatpush1.msra.mxu0 0.0
      %1453 = vmatprep.subr.mxu0 0.0
      %1454 = vmatpush1.msra.mxu0 0.0
      %1455 = vmatprep.subr.mxu0 0.0
      %1456 = vmatpush1.msra.mxu0 0.0
      %1457 = vmatprep.subr.mxu0 0.0
      %1458 = vmatpush1.msra.mxu0 0.0
      %1459 = vmatprep.subr.mxu0 0.0
      %1460 = vmatpush1.msra.mxu0 0.0
      %1461 = vmatprep.subr.mxu0 0.0
      %1462 = vmatpush1.msra.mxu0 0.0
      %1463 = vmatprep.subr.mxu0 0.0
      %1464 = vmatpush1.msra.mxu0 %v530
      %1465 = vmatprep.subr.mxu0 0.0
      %1466 = vmatpush2.msra.mxu0 0.0
      %1467 = vmatprep.subr.mxu0 0.0
      %1468 = vmatpush2.msra.mxu0 0.0
      %1469 = vmatprep.subr.mxu0 0.0
      %1470 = vmatpush2.msra.mxu0 0.0
      %1471 = vmatprep.subr.mxu0 0.0
      %1472 = vmatpush2.msra.mxu0 0.0
      %1473 = vmatprep.subr.mxu0 0.0
      %1474 = vmatpush2.msra.mxu0 0.0
      %1475 = vmatprep.subr.mxu0 0.0
      %1476 = vmatpush2.msra.mxu0 0.0
      %1477 = vmatprep.subr.mxu0 0.0
      %1478 = vmatpush2.msra.mxu0 0.0
      %1479 = vmatprep.subr.mxu0 0.0
      %1480 = vmatpush2.msra.mxu0 0.0
      %1481 = vmatprep.subr.mxu0 0.0
      %1482 = vmatpush2.msra.mxu0 0.0
      %1483 = vmatprep.subr.mxu0 0.0
      %1484 = vmatpush2.msra.mxu0 0.0
      %1485 = vmatprep.subr.mxu0 0.0
      %1486 = vmatpush2.msra.mxu0 0.0
      %1487 = vmatprep.subr.mxu0 0.0
      %1488 = vmatpush2.msra.mxu0 0.0
      %1489 = vmatprep.subr.mxu0 0.0
      %1490 = vmatpush2.msra.mxu0 0.0
      %1491 = vmatprep.subr.mxu0 0.0
      %1492 = vmatpush2.msra.mxu0 0.0
      %1493 = vmatprep.subr.mxu0 0.0
      %1494 = vmatpush2.msra.mxu0 0.0
      %1495 = vmatprep.subr.mxu0 0.0
      %1496 = vmatpush2.msra.mxu0 0.0
      %1497 = vmatprep.mubr.f32.mxu0 0.0
      %1498 = vmatmul.mubr.f32.gmra.mxu0 %v1431
      %v1499 = vpop.f32.mrf.mxu0
      %v1500 = vadd.f32 0.0, %v1499
      %v1501 = vpop.f32.mrf.mxu0
      %1502 = vdwg.mxu0
      %v1504 = vsel %vm1283, %v1270, 0
      %1506 = vmatprep.subr.mxu0 0.0
      %1507 = vmatpush1.msra.mxu0 0.0
      %1508 = vmatprep.subr.mxu0 0.0
      %1509 = vmatpush1.msra.mxu0 0.0
      %1510 = vmatprep.subr.mxu0 0.0
      %1511 = vmatpush1.msra.mxu0 0.0
      %1512 = vmatprep.subr.mxu0 0.0
      %1513 = vmatpush1.msra.mxu0 0.0
      %1514 = vmatprep.subr.mxu0 0.0
      %1515 = vmatpush1.msra.mxu0 0.0
      %1516 = vmatprep.subr.mxu0 0.0
      %1517 = vmatpush1.msra.mxu0 0.0
      %1518 = vmatprep.subr.mxu0 0.0
      %1519 = vmatpush1.msra.mxu0 0.0
      %1520 = vmatprep.subr.mxu0 0.0
      %1521 = vmatpush1.msra.mxu0 0.0
      %1522 = vmatprep.subr.mxu0 0.0
      %1523 = vmatpush1.msra.mxu0 0.0
      %1524 = vmatprep.subr.mxu0 0.0
      %1525 = vmatpush1.msra.mxu0 0.0
      %1526 = vmatprep.subr.mxu0 0.0
      %1527 = vmatpush1.msra.mxu0 0.0
      %1528 = vmatprep.subr.mxu0 0.0
      %1529 = vmatpush1.msra.mxu0 0.0
      %1530 = vmatprep.subr.mxu0 0.0
      %1531 = vmatpush1.msra.mxu0 0.0
      %1532 = vmatprep.subr.mxu0 0.0
      %1533 = vmatpush1.msra.mxu0 0.0
      %1534 = vmatprep.subr.mxu0 0.0
      %1535 = vmatpush1.msra.mxu0 0.0
      %1536 = vmatprep.subr.mxu0 0.0
      %1537 = vmatpush1.msra.mxu0 %v531
      %1538 = vmatprep.subr.mxu0 0.0
      %1539 = vmatpush2.msra.mxu0 0.0
      %1540 = vmatprep.subr.mxu0 0.0
      %1541 = vmatpush2.msra.mxu0 0.0
      %1542 = vmatprep.subr.mxu0 0.0
      %1543 = vmatpush2.msra.mxu0 0.0
      %1544 = vmatprep.subr.mxu0 0.0
      %1545 = vmatpush2.msra.mxu0 0.0
      %1546 = vmatprep.subr.mxu0 0.0
      %1547 = vmatpush2.msra.mxu0 0.0
      %1548 = vmatprep.subr.mxu0 0.0
      %1549 = vmatpush2.msra.mxu0 0.0
      %1550 = vmatprep.subr.mxu0 0.0
      %1551 = vmatpush2.msra.mxu0 0.0
      %1552 = vmatprep.subr.mxu0 0.0
      %1553 = vmatpush2.msra.mxu0 0.0
      %1554 = vmatprep.subr.mxu0 0.0
      %1555 = vmatpush2.msra.mxu0 0.0
      %1556 = vmatprep.subr.mxu0 0.0
      %1557 = vmatpush2.msra.mxu0 0.0
      %1558 = vmatprep.subr.mxu0 0.0
      %1559 = vmatpush2.msra.mxu0 0.0
      %1560 = vmatprep.subr.mxu0 0.0
      %1561 = vmatpush2.msra.mxu0 0.0
      %1562 = vmatprep.subr.mxu0 0.0
      %1563 = vmatpush2.msra.mxu0 0.0
      %1564 = vmatprep.subr.mxu0 0.0
      %1565 = vmatpush2.msra.mxu0 0.0
      %1566 = vmatprep.subr.mxu0 0.0
      %1567 = vmatpush2.msra.mxu0 0.0
      %1568 = vmatprep.subr.mxu0 0.0
      %1569 = vmatpush2.msra.mxu0 0.0
      %1570 = vmatprep.mubr.f32.mxu0 0.0
      %1571 = vmatmul.mubr.f32.gmra.mxu0 %v1504
      %v1572 = vpop.f32.mrf.mxu0
      %v1573 = vadd.f32 0.0, %v1572
      %v1574 = vpop.f32.mrf.mxu0
      %1575 = vdwg.mxu0
      %v1577 = vsel %vm1283, %v1271, 0
      %1579 = vmatprep.subr.mxu0 0.0
      %1580 = vmatpush1.msra.mxu0 0.0
      %1581 = vmatprep.subr.mxu0 0.0
      %1582 = vmatpush1.msra.mxu0 0.0
      %1583 = vmatprep.subr.mxu0 0.0
      %1584 = vmatpush1.msra.mxu0 0.0
      %1585 = vmatprep.subr.mxu0 0.0
      %1586 = vmatpush1.msra.mxu0 0.0
      %1587 = vmatprep.subr.mxu0 0.0
      %1588 = vmatpush1.msra.mxu0 0.0
      %1589 = vmatprep.subr.mxu0 0.0
      %1590 = vmatpush1.msra.mxu0 0.0
      %1591 = vmatprep.subr.mxu0 0.0
      %1592 = vmatpush1.msra.mxu0 0.0
      %1593 = vmatprep.subr.mxu0 0.0
      %1594 = vmatpush1.msra.mxu0 0.0
      %1595 = vmatprep.subr.mxu0 0.0
      %1596 = vmatpush1.msra.mxu0 0.0
      %1597 = vmatprep.subr.mxu0 0.0
      %1598 = vmatpush1.msra.mxu0 0.0
      %1599 = vmatprep.subr.mxu0 0.0
      %1600 = vmatpush1.msra.mxu0 0.0
      %1601 = vmatprep.subr.mxu0 0.0
      %1602 = vmatpush1.msra.mxu0 0.0
      %1603 = vmatprep.subr.mxu0 0.0
      %1604 = vmatpush1.msra.mxu0 0.0
      %1605 = vmatprep.subr.mxu0 0.0
      %1606 = vmatpush1.msra.mxu0 0.0
      %1607 = vmatprep.subr.mxu0 0.0
      %1608 = vmatpush1.msra.mxu0 0.0
      %1609 = vmatprep.subr.mxu0 0.0
      %1610 = vmatpush1.msra.mxu0 %v532
      %1611 = vmatprep.subr.mxu0 0.0
      %1612 = vmatpush2.msra.mxu0 0.0
      %1613 = vmatprep.subr.mxu0 0.0
      %1614 = vmatpush2.msra.mxu0 0.0
      %1615 = vmatprep.subr.mxu0 0.0
      %1616 = vmatpush2.msra.mxu0 0.0
      %1617 = vmatprep.subr.mxu0 0.0
      %1618 = vmatpush2.msra.mxu0 0.0
      %1619 = vmatprep.subr.mxu0 0.0
      %1620 = vmatpush2.msra.mxu0 0.0
      %1621 = vmatprep.subr.mxu0 0.0
      %1622 = vmatpush2.msra.mxu0 0.0
      %1623 = vmatprep.subr.mxu0 0.0
      %1624 = vmatpush2.msra.mxu0 0.0
      %1625 = vmatprep.subr.mxu0 0.0
      %1626 = vmatpush2.msra.mxu0 0.0
      %1627 = vmatprep.subr.mxu0 0.0
      %1628 = vmatpush2.msra.mxu0 0.0
      %1629 = vmatprep.subr.mxu0 0.0
      %1630 = vmatpush2.msra.mxu0 0.0
      %1631 = vmatprep.subr.mxu0 0.0
      %1632 = vmatpush2.msra.mxu0 0.0
      %1633 = vmatprep.subr.mxu0 0.0
      %1634 = vmatpush2.msra.mxu0 0.0
      %1635 = vmatprep.subr.mxu0 0.0
      %1636 = vmatpush2.msra.mxu0 0.0
      %1637 = vmatprep.subr.mxu0 0.0
      %1638 = vmatpush2.msra.mxu0 0.0
      %1639 = vmatprep.subr.mxu0 0.0
      %1640 = vmatpush2.msra.mxu0 0.0
      %1641 = vmatprep.subr.mxu0 0.0
      %1642 = vmatpush2.msra.mxu0 0.0
      %1643 = vmatprep.mubr.f32.mxu0 0.0
      %1644 = vmatmul.mubr.f32.gmra.mxu0 %v1577
      %v1645 = vpop.f32.mrf.mxu0
      %v1646 = vadd.f32 0.0, %v1645
      %v1647 = vpop.f32.mrf.mxu0
      %1648 = vdwg.mxu0
      %v1650 = vsel %vm1283, %v1272, 0
      %1652 = vmatprep.subr.mxu0 0.0
      %1653 = vmatpush1.msra.mxu0 0.0
      %1654 = vmatprep.subr.mxu0 0.0
      %1655 = vmatpush1.msra.mxu0 0.0
      %1656 = vmatprep.subr.mxu0 0.0
      %1657 = vmatpush1.msra.mxu0 0.0
      %1658 = vmatprep.subr.mxu0 0.0
      %1659 = vmatpush1.msra.mxu0 0.0
      %1660 = vmatprep.subr.mxu0 0.0
      %1661 = vmatpush1.msra.mxu0 0.0
      %1662 = vmatprep.subr.mxu0 0.0
      %1663 = vmatpush1.msra.mxu0 0.0
      %1664 = vmatprep.subr.mxu0 0.0
      %1665 = vmatpush1.msra.mxu0 0.0
      %1666 = vmatprep.subr.mxu0 0.0
      %1667 = vmatpush1.msra.mxu0 0.0
      %1668 = vmatprep.subr.mxu0 0.0
      %1669 = vmatpush1.msra.mxu0 0.0
      %1670 = vmatprep.subr.mxu0 0.0
      %1671 = vmatpush1.msra.mxu0 0.0
      %1672 = vmatprep.subr.mxu0 0.0
      %1673 = vmatpush1.msra.mxu0 0.0
      %1674 = vmatprep.subr.mxu0 0.0
      %1675 = vmatpush1.msra.mxu0 0.0
      %1676 = vmatprep.subr.mxu0 0.0
      %1677 = vmatpush1.msra.mxu0 0.0
      %1678 = vmatprep.subr.mxu0 0.0
      %1679 = vmatpush1.msra.mxu0 0.0
      %1680 = vmatprep.subr.mxu0 0.0
      %1681 = vmatpush1.msra.mxu0 0.0
      %1682 = vmatprep.subr.mxu0 0.0
      %1683 = vmatpush1.msra.mxu0 %v533
      %1684 = vmatprep.subr.mxu0 0.0
      %1685 = vmatpush2.msra.mxu0 0.0
      %1686 = vmatprep.subr.mxu0 0.0
      %1687 = vmatpush2.msra.mxu0 0.0
      %1688 = vmatprep.subr.mxu0 0.0
      %1689 = vmatpush2.msra.mxu0 0.0
      %1690 = vmatprep.subr.mxu0 0.0
      %1691 = vmatpush2.msra.mxu0 0.0
      %1692 = vmatprep.subr.mxu0 0.0
      %1693 = vmatpush2.msra.mxu0 0.0
      %1694 = vmatprep.subr.mxu0 0.0
      %1695 = vmatpush2.msra.mxu0 0.0
      %1696 = vmatprep.subr.mxu0 0.0
      %1697 = vmatpush2.msra.mxu0 0.0
      %1698 = vmatprep.subr.mxu0 0.0
      %1699 = vmatpush2.msra.mxu0 0.0
      %1700 = vmatprep.subr.mxu0 0.0
      %1701 = vmatpush2.msra.mxu0 0.0
      %1702 = vmatprep.subr.mxu0 0.0
      %1703 = vmatpush2.msra.mxu0 0.0
      %1704 = vmatprep.subr.mxu0 0.0
      %1705 = vmatpush2.msra.mxu0 0.0
      %1706 = vmatprep.subr.mxu0 0.0
      %1707 = vmatpush2.msra.mxu0 0.0
      %1708 = vmatprep.subr.mxu0 0.0
      %1709 = vmatpush2.msra.mxu0 0.0
      %1710 = vmatprep.subr.mxu0 0.0
      %1711 = vmatpush2.msra.mxu0 0.0
      %1712 = vmatprep.subr.mxu0 0.0
      %1713 = vmatpush2.msra.mxu0 0.0
      %1714 = vmatprep.subr.mxu0 0.0
      %1715 = vmatpush2.msra.mxu0 0.0
      %1716 = vmatprep.mubr.f32.mxu0 0.0
      %1717 = vmatmul.mubr.f32.gmra.mxu0 %v1650
      %v1718 = vpop.f32.mrf.mxu0
      %v1719 = vadd.f32 0.0, %v1718
      %v1720 = vpop.f32.mrf.mxu0
      %1721 = vdwg.mxu0
      %v1723 = vsel %vm1283, %v1273, 0
      %1725 = vmatprep.subr.mxu0 0.0
      %1726 = vmatpush1.msra.mxu0 0.0
      %1727 = vmatprep.subr.mxu0 0.0
      %1728 = vmatpush1.msra.mxu0 0.0
      %1729 = vmatprep.subr.mxu0 0.0
      %1730 = vmatpush1.msra.mxu0 0.0
      %1731 = vmatprep.subr.mxu0 0.0
      %1732 = vmatpush1.msra.mxu0 0.0
      %1733 = vmatprep.subr.mxu0 0.0
      %1734 = vmatpush1.msra.mxu0 0.0
      %1735 = vmatprep.subr.mxu0 0.0
      %1736 = vmatpush1.msra.mxu0 0.0
      %1737 = vmatprep.subr.mxu0 0.0
      %1738 = vmatpush1.msra.mxu0 0.0
      %1739 = vmatprep.subr.mxu0 0.0
      %1740 = vmatpush1.msra.mxu0 0.0
      %1741 = vmatprep.subr.mxu0 0.0
      %1742 = vmatpush1.msra.mxu0 0.0
      %1743 = vmatprep.subr.mxu0 0.0
      %1744 = vmatpush1.msra.mxu0 0.0
      %1745 = vmatprep.subr.mxu0 0.0
      %1746 = vmatpush1.msra.mxu0 0.0
      %1747 = vmatprep.subr.mxu0 0.0
      %1748 = vmatpush1.msra.mxu0 0.0
      %1749 = vmatprep.subr.mxu0 0.0
      %1750 = vmatpush1.msra.mxu0 0.0
      %1751 = vmatprep.subr.mxu0 0.0
      %1752 = vmatpush1.msra.mxu0 0.0
      %1753 = vmatprep.subr.mxu0 0.0
      %1754 = vmatpush1.msra.mxu0 0.0
      %1755 = vmatprep.subr.mxu0 0.0
      %1756 = vmatpush1.msra.mxu0 %v534
      %1757 = vmatprep.subr.mxu0 0.0
      %1758 = vmatpush2.msra.mxu0 0.0
      %1759 = vmatprep.subr.mxu0 0.0
      %1760 = vmatpush2.msra.mxu0 0.0
      %1761 = vmatprep.subr.mxu0 0.0
      %1762 = vmatpush2.msra.mxu0 0.0
      %1763 = vmatprep.subr.mxu0 0.0
      %1764 = vmatpush2.msra.mxu0 0.0
      %1765 = vmatprep.subr.mxu0 0.0
      %1766 = vmatpush2.msra.mxu0 0.0
      %1767 = vmatprep.subr.mxu0 0.0
      %1768 = vmatpush2.msra.mxu0 0.0
      %1769 = vmatprep.subr.mxu0 0.0
      %1770 = vmatpush2.msra.mxu0 0.0
      %1771 = vmatprep.subr.mxu0 0.0
      %1772 = vmatpush2.msra.mxu0 0.0
      %1773 = vmatprep.subr.mxu0 0.0
      %1774 = vmatpush2.msra.mxu0 0.0
      %1775 = vmatprep.subr.mxu0 0.0
      %1776 = vmatpush2.msra.mxu0 0.0
      %1777 = vmatprep.subr.mxu0 0.0
      %1778 = vmatpush2.msra.mxu0 0.0
      %1779 = vmatprep.subr.mxu0 0.0
      %1780 = vmatpush2.msra.mxu0 0.0
      %1781 = vmatprep.subr.mxu0 0.0
      %1782 = vmatpush2.msra.mxu0 0.0
      %1783 = vmatprep.subr.mxu0 0.0
      %1784 = vmatpush2.msra.mxu0 0.0
      %1785 = vmatprep.subr.mxu0 0.0
      %1786 = vmatpush2.msra.mxu0 0.0
      %1787 = vmatprep.subr.mxu0 0.0
      %1788 = vmatpush2.msra.mxu0 0.0
      %1789 = vmatprep.mubr.f32.mxu0 0.0
      %1790 = vmatmul.mubr.f32.gmra.mxu0 %v1723
      %v1791 = vpop.f32.mrf.mxu0
      %v1792 = vadd.f32 0.0, %v1791
      %v1793 = vpop.f32.mrf.mxu0
      %1794 = vdwg.mxu0
      %v1796 = vsel %vm1283, %v1274, 0
      %1798 = vmatprep.subr.mxu0 0.0
      %1799 = vmatpush1.msra.mxu0 0.0
      %1800 = vmatprep.subr.mxu0 0.0
      %1801 = vmatpush1.msra.mxu0 0.0
      %1802 = vmatprep.subr.mxu0 0.0
      %1803 = vmatpush1.msra.mxu0 0.0
      %1804 = vmatprep.subr.mxu0 0.0
      %1805 = vmatpush1.msra.mxu0 0.0
      %1806 = vmatprep.subr.mxu0 0.0
      %1807 = vmatpush1.msra.mxu0 0.0
      %1808 = vmatprep.subr.mxu0 0.0
      %1809 = vmatpush1.msra.mxu0 0.0
      %1810 = vmatprep.subr.mxu0 0.0
      %1811 = vmatpush1.msra.mxu0 0.0
      %1812 = vmatprep.subr.mxu0 0.0
      %1813 = vmatpush1.msra.mxu0 0.0
      %1814 = vmatprep.subr.mxu0 0.0
      %1815 = vmatpush1.msra.mxu0 0.0
      %1816 = vmatprep.subr.mxu0 0.0
      %1817 = vmatpush1.msra.mxu0 0.0
      %1818 = vmatprep.subr.mxu0 0.0
      %1819 = vmatpush1.msra.mxu0 0.0
      %1820 = vmatprep.subr.mxu0 0.0
      %1821 = vmatpush1.msra.mxu0 0.0
      %1822 = vmatprep.subr.mxu0 0.0
      %1823 = vmatpush1.msra.mxu0 0.0
      %1824 = vmatprep.subr.mxu0 0.0
      %1825 = vmatpush1.msra.mxu0 0.0
      %1826 = vmatprep.subr.mxu0 0.0
      %1827 = vmatpush1.msra.mxu0 0.0
      %1828 = vmatprep.subr.mxu0 0.0
      %1829 = vmatpush1.msra.mxu0 %v535
      %1830 = vmatprep.subr.mxu0 0.0
      %1831 = vmatpush2.msra.mxu0 0.0
      %1832 = vmatprep.subr.mxu0 0.0
      %1833 = vmatpush2.msra.mxu0 0.0
      %1834 = vmatprep.subr.mxu0 0.0
      %1835 = vmatpush2.msra.mxu0 0.0
      %1836 = vmatprep.subr.mxu0 0.0
      %1837 = vmatpush2.msra.mxu0 0.0
      %1838 = vmatprep.subr.mxu0 0.0
      %1839 = vmatpush2.msra.mxu0 0.0
      %1840 = vmatprep.subr.mxu0 0.0
      %1841 = vmatpush2.msra.mxu0 0.0
      %1842 = vmatprep.subr.mxu0 0.0
      %1843 = vmatpush2.msra.mxu0 0.0
      %1844 = vmatprep.subr.mxu0 0.0
      %1845 = vmatpush2.msra.mxu0 0.0
      %1846 = vmatprep.subr.mxu0 0.0
      %1847 = vmatpush2.msra.mxu0 0.0
      %1848 = vmatprep.subr.mxu0 0.0
      %1849 = vmatpush2.msra.mxu0 0.0
      %1850 = vmatprep.subr.mxu0 0.0
      %1851 = vmatpush2.msra.mxu0 0.0
      %1852 = vmatprep.subr.mxu0 0.0
      %1853 = vmatpush2.msra.mxu0 0.0
      %1854 = vmatprep.subr.mxu0 0.0
      %1855 = vmatpush2.msra.mxu0 0.0
      %1856 = vmatprep.subr.mxu0 0.0
      %1857 = vmatpush2.msra.mxu0 0.0
      %1858 = vmatprep.subr.mxu0 0.0
      %1859 = vmatpush2.msra.mxu0 0.0
      %1860 = vmatprep.subr.mxu0 0.0
      %1861 = vmatpush2.msra.mxu0 0.0
      %1862 = vmatprep.mubr.f32.mxu0 0.0
      %1863 = vmatmul.mubr.f32.gmra.mxu0 %v1796
      %v1864 = vpop.f32.mrf.mxu0
      %v1865 = vadd.f32 0.0, %v1864
      %v1866 = vpop.f32.mrf.mxu0
      %1867 = vdwg.mxu0
      %v1868 = vadd.f32 %v1354, 0.0
      %v1869 = vadd.f32 %v1427, 0.0
      %v1870 = vadd.f32 %v1500, 0.0
      %v1871 = vadd.f32 %v1573, 0.0
      %v1872 = vadd.f32 %v1646, 0.0
      %v1873 = vadd.f32 %v1719, 0.0
      %v1874 = vadd.f32 %v1792, 0.0
      %v1875 = vadd.f32 %v1865, 0.0
      %v1884 = vrot.slane %v1869, 7
      %vm1885 = vcmask 1041409
      %v1886 = vsel %vm1885, %v1884, %v1868
      %v1887 = vrot.slane %v1870, 6
      %vm1888 = vcmask 1042434
      %v1889 = vsel %vm1888, %v1887, %v1886
      %v1890 = vrot.slane %v1871, 5
      %vm1891 = vcmask 1043459
      %v1892 = vsel %vm1891, %v1890, %v1889
      %v1893 = vrot.slane %v1872, 4
      %vm1894 = vcmask 1044484
      %v1895 = vsel %vm1894, %v1893, %v1892
      %v1896 = vrot.slane %v1873, 3
      %vm1897 = vcmask 1045509
      %v1898 = vsel %vm1897, %v1896, %v1895
      %v1899 = vrot.slane %v1874, 2
      %vm1900 = vcmask 1046534
      %v1901 = vsel %vm1900, %v1899, %v1898
      %v1902 = vrot.slane %v1875, 1
      %vm1903 = vcmask 1047559
      %v1904 = vsel %vm1903, %v1902, %v1901
      %1906 = vst.msk [vmem:[#allocation18] sm:$0xff] %vm188, %v1904
      %v1907 = vld [vmem:[#allocation12] sm:$0xff]
      %v1908 = vld [vmem:[#allocation12 + $0x8] sm:$0xff]
      %v1909 = vld [vmem:[#allocation12 + $0x10] sm:$0xff]
      %v1910 = vld [vmem:[#allocation12 + $0x18] sm:$0xff]
      %v1911 = vld [vmem:[#allocation14] sm:$0xff]
      %v1912 = vld [vmem:[#allocation14 + $0x8] sm:$0xff]
      %v1913 = vld [vmem:[#allocation14 + $0x10] sm:$0xff]
      %v1914 = vld [vmem:[#allocation14 + $0x18] sm:$0xff]
      %v1915 = vsel %vm188, %v1904, 0
      %1917 = vmatprep.subr.mxu0 0.0
      %1918 = vmatpush1.msra.mxu0 0.0
      %1919 = vmatprep.subr.mxu0 0.0
      %1920 = vmatpush1.msra.mxu0 0.0
      %1921 = vmatprep.subr.mxu0 0.0
      %1922 = vmatpush1.msra.mxu0 0.0
      %1923 = vmatprep.subr.mxu0 0.0
      %1924 = vmatpush1.msra.mxu0 0.0
      %1925 = vmatprep.subr.mxu0 0.0
      %1926 = vmatpush1.msra.mxu0 0.0
      %1927 = vmatprep.subr.mxu0 0.0
      %1928 = vmatpush1.msra.mxu0 0.0
      %1929 = vmatprep.subr.mxu0 0.0
      %1930 = vmatpush1.msra.mxu0 0.0
      %1931 = vmatprep.subr.mxu0 0.0
      %1932 = vmatpush1.msra.mxu0 0.0
      %1933 = vmatprep.subr.mxu0 0.0
      %1934 = vmatpush1.msra.mxu0 0.0
      %1935 = vmatprep.subr.mxu0 0.0
      %1936 = vmatpush1.msra.mxu0 0.0
      %1937 = vmatprep.subr.mxu0 0.0
      %1938 = vmatpush1.msra.mxu0 0.0
      %1939 = vmatprep.subr.mxu0 0.0
      %1940 = vmatpush1.msra.mxu0 0.0
      %1941 = vmatprep.subr.mxu0 0.0
      %1942 = vmatpush1.msra.mxu0 %v1914
      %1943 = vmatprep.subr.mxu0 0.0
      %1944 = vmatpush1.msra.mxu0 %v1913
      %1945 = vmatprep.subr.mxu0 0.0
      %1946 = vmatpush1.msra.mxu0 %v1912
      %1947 = vmatprep.subr.mxu0 0.0
      %1948 = vmatpush1.msra.mxu0 %v1911
      %1949 = vmatprep.subr.mxu0 0.0
      %1950 = vmatpush2.msra.mxu0 0.0
      %1951 = vmatprep.subr.mxu0 0.0
      %1952 = vmatpush2.msra.mxu0 0.0
      %1953 = vmatprep.subr.mxu0 0.0
      %1954 = vmatpush2.msra.mxu0 0.0
      %1955 = vmatprep.subr.mxu0 0.0
      %1956 = vmatpush2.msra.mxu0 0.0
      %1957 = vmatprep.subr.mxu0 0.0
      %1958 = vmatpush2.msra.mxu0 0.0
      %1959 = vmatprep.subr.mxu0 0.0
      %1960 = vmatpush2.msra.mxu0 0.0
      %1961 = vmatprep.subr.mxu0 0.0
      %1962 = vmatpush2.msra.mxu0 0.0
      %1963 = vmatprep.subr.mxu0 0.0
      %1964 = vmatpush2.msra.mxu0 0.0
      %1965 = vmatprep.subr.mxu0 0.0
      %1966 = vmatpush2.msra.mxu0 0.0
      %1967 = vmatprep.subr.mxu0 0.0
      %1968 = vmatpush2.msra.mxu0 0.0
      %1969 = vmatprep.subr.mxu0 0.0
      %1970 = vmatpush2.msra.mxu0 0.0
      %1971 = vmatprep.subr.mxu0 0.0
      %1972 = vmatpush2.msra.mxu0 0.0
      %1973 = vmatprep.subr.mxu0 0.0
      %1974 = vmatpush2.msra.mxu0 0.0
      %1975 = vmatprep.subr.mxu0 0.0
      %1976 = vmatpush2.msra.mxu0 0.0
      %1977 = vmatprep.subr.mxu0 0.0
      %1978 = vmatpush2.msra.mxu0 0.0
      %1979 = vmatprep.subr.mxu0 0.0
      %1980 = vmatpush2.msra.mxu0 0.0
      %1981 = vmatprep.mubr.f32.mxu0 0.0
      %1982 = vmatmul.mubr.f32.gmra.mxu0 %v1915
      %v1983 = vpop.f32.mrf.mxu0
      %v1984 = vadd.f32 0.0, %v1983
      %v1985 = vpop.f32.mrf.mxu0
      %1986 = vdwg.mxu0
      %v1987 = vsel %vm188, %v526, 0
      %1989 = vmatprep.subr.mxu0 0.0
      %1990 = vmatpush1.msra.mxu0 0.0
      %1991 = vmatprep.subr.mxu0 0.0
      %1992 = vmatpush1.msra.mxu0 0.0
      %1993 = vmatprep.subr.mxu0 0.0
      %1994 = vmatpush1.msra.mxu0 0.0
      %1995 = vmatprep.subr.mxu0 0.0
      %1996 = vmatpush1.msra.mxu0 0.0
      %1997 = vmatprep.subr.mxu0 0.0
      %1998 = vmatpush1.msra.mxu0 0.0
      %1999 = vmatprep.subr.mxu0 0.0
      %2000 = vmatpush1.msra.mxu0 0.0
      %2001 = vmatprep.subr.mxu0 0.0
      %2002 = vmatpush1.msra.mxu0 0.0
      %2003 = vmatprep.subr.mxu0 0.0
      %2004 = vmatpush1.msra.mxu0 0.0
      %2005 = vmatprep.subr.mxu0 0.0
      %2006 = vmatpush1.msra.mxu0 0.0
      %2007 = vmatprep.subr.mxu0 0.0
      %2008 = vmatpush1.msra.mxu0 0.0
      %2009 = vmatprep.subr.mxu0 0.0
      %2010 = vmatpush1.msra.mxu0 0.0
      %2011 = vmatprep.subr.mxu0 0.0
      %2012 = vmatpush1.msra.mxu0 0.0
      %2013 = vmatprep.subr.mxu0 0.0
      %2014 = vmatpush1.msra.mxu0 %v1910
      %2015 = vmatprep.subr.mxu0 0.0
      %2016 = vmatpush1.msra.mxu0 %v1909
      %2017 = vmatprep.subr.mxu0 0.0
      %2018 = vmatpush1.msra.mxu0 %v1908
      %2019 = vmatprep.subr.mxu0 0.0
      %2020 = vmatpush1.msra.mxu0 %v1907
      %2021 = vmatprep.subr.mxu0 0.0
      %2022 = vmatpush2.msra.mxu0 0.0
      %2023 = vmatprep.subr.mxu0 0.0
      %2024 = vmatpush2.msra.mxu0 0.0
      %2025 = vmatprep.subr.mxu0 0.0
      %2026 = vmatpush2.msra.mxu0 0.0
      %2027 = vmatprep.subr.mxu0 0.0
      %2028 = vmatpush2.msra.mxu0 0.0
      %2029 = vmatprep.subr.mxu0 0.0
      %2030 = vmatpush2.msra.mxu0 0.0
      %2031 = vmatprep.subr.mxu0 0.0
      %2032 = vmatpush2.msra.mxu0 0.0
      %2033 = vmatprep.subr.mxu0 0.0
      %2034 = vmatpush2.msra.mxu0 0.0
      %2035 = vmatprep.subr.mxu0 0.0
      %2036 = vmatpush2.msra.mxu0 0.0
      %2037 = vmatprep.subr.mxu0 0.0
      %2038 = vmatpush2.msra.mxu0 0.0
      %2039 = vmatprep.subr.mxu0 0.0
      %2040 = vmatpush2.msra.mxu0 0.0
      %2041 = vmatprep.subr.mxu0 0.0
      %2042 = vmatpush2.msra.mxu0 0.0
      %2043 = vmatprep.subr.mxu0 0.0
      %2044 = vmatpush2.msra.mxu0 0.0
      %2045 = vmatprep.subr.mxu0 0.0
      %2046 = vmatpush2.msra.mxu0 0.0
      %2047 = vmatprep.subr.mxu0 0.0
      %2048 = vmatpush2.msra.mxu0 0.0
      %2049 = vmatprep.subr.mxu0 0.0
      %2050 = vmatpush2.msra.mxu0 0.0
      %2051 = vmatprep.subr.mxu0 0.0
      %2052 = vmatpush2.msra.mxu0 0.0
      %2053 = vmatprep.mubr.f32.mxu0 0.0
      %2054 = vmatmul.mubr.f32.gmra.mxu0 %v1987
      %v2055 = vpop.f32.mrf.mxu0
      %v2056 = vadd.f32 %v1984, %v2055
      %v2057 = vpop.f32.mrf.mxu0
      %2058 = vdwg.mxu0
      %v2059 = vld [vmem:[%s9] sm:$0x1]
      %v2061 = vlaneseq
      %v2062 = vshrl.u32 %v2061, 7
      %v2063 = vsub.s32 0, %v2062
      %v2064 = vrot.slane %v2059, %v2063
      %v2066 = vadd.f32 %v2056, %v2064
      %v2067 = vtanh.pop %v2066
      %2068 = vst.msk [vmem:[#allocation2] sm:$0xff] %vm188, %v2067
    $region85: #{tpu_custom_call.1} parent=1 // pred_fallthru
      _
    %v2069 = vld [vmem:[#allocation2] sm:$0xff]
    %v2070 = vld [vmem:[#allocation15] sm:$0xff]
    %v2071 = vld [vmem:[#allocation15 + $0x8] sm:$0xff]
    %v2072 = vld [vmem:[#allocation15 + $0x10] sm:$0xff]
    %v2073 = vld [vmem:[#allocation15 + $0x18] sm:$0xff]
    %v2074 = vld [vmem:[%s11] sm:$0x1]
    %v2076 = vlaneseq
    %v2077 = vshrl.u32 %v2076, 7
    %v2078 = vsub.s32 0, %v2077
    %v2079 = vrot.slane %v2074, %v2078
    %vm2081 = vcmask 261120
    %v2083 = vsel %vm2081, %v2069, 0
    %2085 = vmatprep.subr.mxu0 0.0
    %2086 = vmatpush1.msra.mxu0 0.0
    %2087 = vmatprep.subr.mxu0 0.0
    %2088 = vmatpush1.msra.mxu0 0.0
    %2089 = vmatprep.subr.mxu0 0.0
    %2090 = vmatpush1.msra.mxu0 0.0
    %2091 = vmatprep.subr.mxu0 0.0
    %2092 = vmatpush1.msra.mxu0 0.0
    %2093 = vmatprep.subr.mxu0 0.0
    %2094 = vmatpush1.msra.mxu0 0.0
    %2095 = vmatprep.subr.mxu0 0.0
    %2096 = vmatpush1.msra.mxu0 0.0
    %2097 = vmatprep.subr.mxu0 0.0
    %2098 = vmatpush1.msra.mxu0 0.0
    %2099 = vmatprep.subr.mxu0 0.0
    %2100 = vmatpush1.msra.mxu0 0.0
    %2101 = vmatprep.subr.mxu0 0.0
    %2102 = vmatpush1.msra.mxu0 0.0
    %2103 = vmatprep.subr.mxu0 0.0
    %2104 = vmatpush1.msra.mxu0 0.0
    %2105 = vmatprep.subr.mxu0 0.0
    %2106 = vmatpush1.msra.mxu0 0.0
    %2107 = vmatprep.subr.mxu0 0.0
    %2108 = vmatpush1.msra.mxu0 0.0
    %2109 = vmatprep.subr.mxu0 0.0
    %2110 = vmatpush1.msra.mxu0 %v2073
    %2111 = vmatprep.subr.mxu0 0.0
    %2112 = vmatpush1.msra.mxu0 %v2072
    %2113 = vmatprep.subr.mxu0 0.0
    %2114 = vmatpush1.msra.mxu0 %v2071
    %2115 = vmatprep.subr.mxu0 0.0
    %2116 = vmatpush1.msra.mxu0 %v2070
    %2117 = vmatprep.subr.mxu0 0.0
    %2118 = vmatpush2.msra.mxu0 0.0
    %2119 = vmatprep.subr.mxu0 0.0
    %2120 = vmatpush2.msra.mxu0 0.0
    %2121 = vmatprep.subr.mxu0 0.0
    %2122 = vmatpush2.msra.mxu0 0.0
    %2123 = vmatprep.subr.mxu0 0.0
    %2124 = vmatpush2.msra.mxu0 0.0
    %2125 = vmatprep.subr.mxu0 0.0
    %2126 = vmatpush2.msra.mxu0 0.0
    %2127 = vmatprep.subr.mxu0 0.0
    %2128 = vmatpush2.msra.mxu0 0.0
    %2129 = vmatprep.subr.mxu0 0.0
    %2130 = vmatpush2.msra.mxu0 0.0
    %2131 = vmatprep.subr.mxu0 0.0
    %2132 = vmatpush2.msra.mxu0 0.0
    %2133 = vmatprep.subr.mxu0 0.0
    %2134 = vmatpush2.msra.mxu0 0.0
    %2135 = vmatprep.subr.mxu0 0.0
    %2136 = vmatpush2.msra.mxu0 0.0
    %2137 = vmatprep.subr.mxu0 0.0
    %2138 = vmatpush2.msra.mxu0 0.0
    %2139 = vmatprep.subr.mxu0 0.0
    %2140 = vmatpush2.msra.mxu0 0.0
    %2141 = vmatprep.subr.mxu0 0.0
    %2142 = vmatpush2.msra.mxu0 0.0
    %2143 = vmatprep.subr.mxu0 0.0
    %2144 = vmatpush2.msra.mxu0 0.0
    %2145 = vmatprep.subr.mxu0 0.0
    %2146 = vmatpush2.msra.mxu0 0.0
    %2147 = vmatprep.subr.mxu0 0.0
    %2148 = vmatpush2.msra.mxu0 0.0
    %2149 = vmatprep.mubr.f32.mxu0 0.0
    %2150 = vmatmul.mubr.f32.gmra.mxu0 %v2083
    %v2151 = vpop.f32.mrf.mxu0
    %v2152 = vadd.f32 %v2079, %v2151
    %v2153 = vpop.f32.mrf.mxu0
    %2154 = vdwg.mxu0
    %2155 = vst [vmem:[#allocation17] sm:$0xff] %v2152
    // Predicated region
    $region86: #{tpu_custom_call.1} parent=1 // pred_check
      _
    $region87: #{tpu_custom_call.1} parent=1 // pred_check_branch
      %2157 = sbr.rel (0) target = $region89
    $region88: #{tpu_custom_call.1} parent=1 // pred_region
      %s2159 = ssub.s32 128, 128
      %2160 = vsyncadd [#allocation5], %s2159
      %s2162 = sshll.u32 [#allocation17], 4
      %s2163 = int_to_ptr.vmem [resolvable:$true] %s2162
      %2165 = dma.vmem_to_hbm [thread:$0]  %s2163, 128, %s12, [#allocation5]
    $region89: #{tpu_custom_call.1} parent=1 // pred_fallthru
      _
    // Predicated region
    $region90: #{tpu_custom_call.1} parent=1 // pred_check
      _
    $region91: #{tpu_custom_call.1} parent=1 // pred_check_branch
      %2167 = sbr.rel (0) target = $region93
    $region92: #{tpu_custom_call.1} parent=1 // pred_region
      %s2169 = ssub.s32 128, 128
      %2170 = vsyncadd [#allocation19], %s2169
      %s2172 = sshll.u32 [#allocation18], 4
      %s2173 = int_to_ptr.vmem [resolvable:$true] %s2172
      %2175 = dma.vmem_to_hbm [thread:$0]  %s2173, 128, %s13, [#allocation19]
    $region93: #{tpu_custom_call.1} parent=1 // pred_fallthru
      _
    // Predicated region
    $region94: #{tpu_custom_call.1} parent=1 // pred_check
      _
    $region95: #{tpu_custom_call.1} parent=1 // pred_check_branch
      %2177 = sbr.rel (0) target = $region97
    $region96: #{tpu_custom_call.1} parent=1 // pred_region
      %s2179 = ssub.s32 128, 128
      %2180 = vsyncadd [#allocation19], %s2179
      %s2182 = sshll.u32 [#allocation20], 4
      %s2183 = int_to_ptr.vmem [resolvable:$true] %s2182
      %2185 = dma.vmem_to_hbm [thread:$0]  %s2183, 128, %s14, [#allocation19]
    $region97: #{tpu_custom_call.1} parent=1 // pred_fallthru
      _
    // Predicated region
    $region98: #{tpu_custom_call.1} parent=1 // pred_check
      _
    $region99: #{tpu_custom_call.1} parent=1 // pred_check_branch
      %2187 = sbr.rel (0) target = $region101
    $region100: #{tpu_custom_call.1} parent=1 // pred_region
      %s2189 = ssub.s32 128, 128
      %2190 = vsyncadd [#allocation22], %s2189
      %s2191 = sshll.u32 [#allocation21], 4
      %s2192 = int_to_ptr.vmem [resolvable:$true] %s2191
      %2197 = dma.vmem_to_hbm [thread:$0]  %s2192, 128, %s15, [#allocation22], 16, 16, 1
    $region101: #{tpu_custom_call.1} parent=1 // pred_fallthru
      _
    // Predicated region
    $region102: #{tpu_custom_call.1} parent=1 // pred_check
      _
    $region103: #{tpu_custom_call.1} parent=1 // pred_check_branch
      %2199 = sbr.rel (0) target = $region105
    $region104: #{tpu_custom_call.1} parent=1 // pred_region
      %2200 = dma.done [#allocation5], 128
    $region105: #{tpu_custom_call.1} parent=1 // pred_fallthru
      _
    // Predicated region
    $region106: #{tpu_custom_call.1} parent=1 // pred_check
      _
    $region107: #{tpu_custom_call.1} parent=1 // pred_check_branch
      %2202 = sbr.rel (0) target = $region109
    $region108: #{tpu_custom_call.1} parent=1 // pred_region
      %2203 = dma.done [#allocation19], 128
    $region109: #{tpu_custom_call.1} parent=1 // pred_fallthru
      _
    // Predicated region
    $region110: #{tpu_custom_call.1} parent=1 // pred_check
      _
    $region111: #{tpu_custom_call.1} parent=1 // pred_check_branch
      %2205 = sbr.rel (0) target = $region113
    $region112: #{tpu_custom_call.1} parent=1 // pred_region
      %2206 = dma.done [#allocation19], 128
    $region113: #{tpu_custom_call.1} parent=1 // pred_fallthru
      _
    // Predicated region
    $region114: #{tpu_custom_call.1} parent=1 // pred_check
      _
    $region115: #{tpu_custom_call.1} parent=1 // pred_check_branch
      %2208 = sbr.rel (0) target = $region117
    $region116: #{tpu_custom_call.1} parent=1 // pred_region
      %2209 = dma.done [#allocation22], 128
    $region117: #{tpu_custom_call.1} parent=1 // pred_fallthru
      _
    %2210 = vsyncpa [#allocation4], 1
    %2211 = vsyncpa [#allocation7], 1
    %2212 = vsyncpa [#allocation10], 1
    %2213 = vsyncpa [#allocation13], 1
    %2214 = vsyncpa [#allocation16], 1
    %2215 = vsyncpa [#allocation5], 1
    %2216 = vsyncpa [#allocation19], 1
    %2217 = vsyncpa [#allocation22], 1

</llo_original>
